<compile_context>
chip_gen: v7x
topology: tpu7x:2x2x1
jax: 0.10.0
libtpu: 0.0.40
codegen_flags: <defaults>
</compile_context>

<pallas_src>
import functools

import jax
import jax.numpy as jnp
from jax.experimental import pallas as pl
from jax.experimental.pallas import tpu as pltpu


# ----------------------------------------------------------------------------
# Fused Pallas kernel: entire EdgePredict forward on VMEM-resident data
# ----------------------------------------------------------------------------
def _fused_edge_predict_kernel(*refs, n_layers, residuals):
    """refs layout (inputs then output):
       src (NE,1) i32, dst (NE,1) i32, feat (N,1024) bf16,
       adj (N,N) bf16 (raw counts), inv_deg (N,1) f32,
       emb_w (1024,H) bf16, emb_b (1,H) f32,
       per layer: w_h (din,dout) bf16, w_c (din,dout) bf16, b (1,dout) f32,
                  bn_scale (1,dout) f32, bn_shift (1,dout) f32,
       mlp: w0_src (D,d1) bf16, w0_dst (D,d1) bf16, b0 (1,d1) f32,
            w1 (d1,d2) bf16, b1 (1,d2) f32, w2p (d2,128) bf16, b2p (1,128) f32,
       out: o_ref (NE, 128) f32 (lane-dense slab; real logits in [:, :n_classes])."""
    (src_ref, dst_ref, feat_ref, adj_ref, inv_deg_ref,
     emb_w_ref, emb_b_ref) = refs[:7]
    layer_refs = refs[7:7 + 5 * n_layers]
    (w0s_ref, w0d_ref, b0_ref, w1_ref, b1_ref, w2_ref, b2_ref) = refs[7 + 5 * n_layers:-1]
    o_ref = refs[-1]

    # ---- embedding_h: bf16 operands on the MXU, f32 accumulation.
    h = (jnp.dot(feat_ref[...], emb_w_ref[...], preferred_element_type=jnp.float32)
         + emb_b_ref[...])

    adj = adj_ref[...]          # bf16 raw adjacency counts (dst-row, src-col)
    inv_deg = inv_deg_ref[...]  # f32 (N, 1): 1 / max(in_deg, 1)

    for li in range(n_layers):
        w_h_ref, w_c_ref, b_ref, bn_scale_ref, bn_shift_ref = layer_refs[5 * li:5 * li + 5]
        h_in = h                                   # f32 for the elementwise path
        h_b = h_in.astype(jnp.bfloat16)            # bf16 only at MXU inputs
        # mean aggregation over in-neighbors, normalization fused in-kernel:
        # c = inv_deg * (adj @ h)   (MXU bf16 + VPU per-row scale)
        c = jnp.dot(adj, h_b, preferred_element_type=jnp.float32) * inv_deg
        # NodeApply: Linear(2*din -> dout) on cat[h, c] == h @ W_h + c @ W_c
        # (weight pre-split on the host; avoids any concat lane-relayout copy).
        z = (jnp.dot(h_b, w_h_ref[...], preferred_element_type=jnp.float32)
             + jnp.dot(c.astype(jnp.bfloat16), w_c_ref[...],
                       preferred_element_type=jnp.float32)
             + b_ref[...])
        # F.normalize(p=2, dim=1): z / max(||z||_2, 1e-12)
        # (rsqrt of the clamped squared norm is exactly equivalent, runs on the EUP)
        sumsq = jnp.sum(z * z, axis=-1, keepdims=True)
        z = z * jax.lax.rsqrt(jnp.maximum(sumsq, 1e-24))
        # activation
        z = jnp.maximum(z, 0.0)
        # BatchNorm1d (eval): precomputed affine scale/shift
        z = z * bn_scale_ref[...] + bn_shift_ref[...]
        if residuals[li]:
            z = z + h_in
        h = z

    # ---- apply_edges: e = MLPReadout(cat[h[src], h[dst]]).
    # Gather done in VMEM via bf16 one-hot matmuls on node-level projections
    # (h @ W0_src / h @ W0_dst), so the (NE, 2*D) concat buffer never exists.
    # TODO(synk): at large NE/N, switch to an SMEM-indexed gather via
    #             PrefetchScalarGridSpec + pl.ds per edge tile (O(NE*d1) instead of
    #             O(NE*N*d1) MXU work) and add a parallel grid over edge tiles so
    #             both v7x TensorCores are used.
    ne = src_ref.shape[0]
    n_nodes = adj_ref.shape[0]
    node_ids = jax.lax.broadcasted_iota(jnp.int32, (ne, n_nodes), 1)
    g_src = (node_ids == src_ref[...]).astype(jnp.bfloat16)   # (NE, N) one-hot, exact 0/1
    g_dst = (node_ids == dst_ref[...]).astype(jnp.bfloat16)

    h_b = h.astype(jnp.bfloat16)
    p_src = jnp.dot(h_b, w0s_ref[...], preferred_element_type=jnp.float32).astype(jnp.bfloat16)
    p_dst = jnp.dot(h_b, w0d_ref[...], preferred_element_type=jnp.float32).astype(jnp.bfloat16)
    y = (jnp.dot(g_src, p_src, preferred_element_type=jnp.float32)
         + jnp.dot(g_dst, p_dst, preferred_element_type=jnp.float32)
         + b0_ref[...])
    y = jnp.maximum(y, 0.0)
    y = jnp.dot(y.astype(jnp.bfloat16), w1_ref[...],
                preferred_element_type=jnp.float32) + b1_ref[...]
    y = jnp.maximum(y, 0.0)
    # Final weight/bias are zero-padded to 128 output lanes on the host, so this matmul
    # directly produces a lane-dense (NE, 128) slab -> unmasked vst on the writeback.
    y = jnp.dot(y.astype(jnp.bfloat16), w2_ref[...],
                preferred_element_type=jnp.float32) + b2_ref[...]
    o_ref[...] = y.astype(o_ref.dtype)


# ----------------------------------------------------------------------------
# Parameter construction (deterministic, synthetic)
# ----------------------------------------------------------------------------
def make_params(key, in_dim_node, hidden_dim, out_dim, n_layers, n_classes):
    params = {}
    scale = 0.05

    key, k1, k2 = jax.random.split(key, 3)
    params['emb_w'] = scale * jax.random.normal(k1, (in_dim_node, hidden_dim), jnp.float32)
    params['emb_b'] = scale * jax.random.normal(k2, (1, hidden_dim), jnp.float32)

    layers = []
    dims = [hidden_dim] * (n_layers - 1) + [out_dim]
    din = hidden_dim
    for dout in dims:
        key, ka, kb, kc, kd = jax.random.split(key, 5)
        # NodeApply linear is (2*din -> dout); rows [0:din] multiply h, [din:] multiply c.
        w_cat = scale * jax.random.normal(ka, (2 * din, dout), jnp.float32)
        b = scale * jax.random.normal(kb, (1, dout), jnp.float32)
        gamma = 1.0 + 0.1 * jax.random.normal(kc, (1, dout), jnp.float32)
        beta = 0.1 * jax.random.normal(kd, (1, dout), jnp.float32)
        # BatchNorm eval with fresh running stats (mean=0, var=1, eps=1e-5):
        bn_scale = gamma / jnp.sqrt(1.0 + 1e-5)
        bn_shift = beta
        layers.append(dict(w_h=w_cat[:din], w_c=w_cat[din:], b=b,
                           bn_scale=bn_scale, bn_shift=bn_shift,
                           residual=(din == dout)))
        din = dout
    params['layers'] = layers

    # MLPReadout(2*out_dim -> n_classes, L=2): 2D -> D -> D/2 -> n_classes.
    # First weight pre-split into src/dst halves (rows [0:D] / [D:2D] of the 2D->D linear).
    d1, d2 = out_dim, out_dim // 2
    key, k1, k2, k3, k4, k5, k6, k7 = jax.random.split(key, 8)
    params['mlp'] = dict(
        w0_src=scale * jax.random.normal(k1, (out_dim, d1), jnp.float32),
        w0_dst=scale * jax.random.normal(k2, (out_dim, d1), jnp.float32),
        b0=scale * jax.random.normal(k3, (1, d1), jnp.float32),
        w1=scale * jax.random.normal(k4, (d1, d2), jnp.float32),
        b1=scale * jax.random.normal(k5, (1, d2), jnp.float32),
        w2=scale * jax.random.normal(k6, (d2, n_classes), jnp.float32),
        b2=scale * jax.random.normal(k7, (1, n_classes), jnp.float32),
    )
    return params


# ----------------------------------------------------------------------------
# Forward pass: one fused pallas_call (adjacency build is tiny XLA glue)
# ----------------------------------------------------------------------------
def edge_predict_forward(params, node_feat, src, dst, n_nodes):
    n_edges = src.shape[0]
    # Raw dense in-neighbor adjacency counts: adj[i, j] = #edges j->i.
    # Normalization (mean aggregator) is fused into the kernel via inv_deg.
    # TODO(synk): replace with a segment-sum / blocked sparse aggregation when N grows
    #             (dense A is O(N^2) and hits v7x's 64 MiB VMEM first even in bf16).
    adj = jnp.zeros((n_nodes, n_nodes), jnp.float32).at[dst, src].add(1.0)
    in_deg = jnp.sum(adj, axis=1, keepdims=True)
    inv_deg = 1.0 / jnp.maximum(in_deg, 1.0)   # zero-neighbor rows -> c stays 0 (DGL mean)

    n_layers = len(params['layers'])
    residuals = tuple(bool(lp['residual']) for lp in params['layers'])
    n_classes = params['mlp']['w2'].shape[1]
    in_dim_node, hidden_dim = params['emb_w'].shape
    out_dim = params['layers'][-1]['w_h'].shape[1]
    d1, d2 = params['mlp']['w1'].shape

    # Lane-dense output slab: pad the final linear to 128 output lanes (zeros beyond
    # n_classes, so padded logits are exactly 0) and slice in the wrapper.
    pad_c = 128
    w2p = jnp.zeros((d2, pad_c), jnp.float32).at[:, :n_classes].set(params['mlp']['w2'])
    b2p = jnp.zeros((1, pad_c), jnp.float32).at[:, :n_classes].set(params['mlp']['b2'])

    inputs = [
        src.reshape(n_edges, 1).astype(jnp.int32),
        dst.reshape(n_edges, 1).astype(jnp.int32),
        node_feat.astype(jnp.bfloat16),            # bf16 operands for the K=1024 matmul
        adj.astype(jnp.bfloat16),                  # raw counts are small ints: exact in bf16
        inv_deg,
        params['emb_w'].astype(jnp.bfloat16),
        params['emb_b'],
    ]
    for lp in params['layers']:
        inputs += [lp['w_h'].astype(jnp.bfloat16), lp['w_c'].astype(jnp.bfloat16),
                   lp['b'], lp['bn_scale'], lp['bn_shift']]
    mlp = params['mlp']
    inputs += [mlp['w0_src'].astype(jnp.bfloat16), mlp['w0_dst'].astype(jnp.bfloat16),
               mlp['b0'], mlp['w1'].astype(jnp.bfloat16), mlp['b1'],
               w2p.astype(jnp.bfloat16), b2p]

    kernel = functools.partial(_fused_edge_predict_kernel,
                               n_layers=n_layers, residuals=residuals)

    # Advisory cost estimate so XLA schedules the adjacency scatter-add glue sensibly.
    flops = 2 * n_nodes * in_dim_node * hidden_dim
    din = hidden_dim
    for lp in params['layers']:
        dout = lp['w_h'].shape[1]
        flops += 2 * n_nodes * n_nodes * din            # aggregation matmul
        flops += 2 * 2 * n_nodes * din * dout           # split NodeApply matmuls
        din = dout
    flops += 2 * 2 * n_nodes * out_dim * d1             # node-level MLP projections
    flops += 2 * 2 * n_edges * n_nodes * d1             # one-hot gather matmuls
    flops += 2 * n_edges * d1 * d2 + 2 * n_edges * d2 * pad_c
    transcendentals = n_layers * n_nodes                # one rsqrt per node per layer
    bytes_accessed = (sum(int(x.size) * x.dtype.itemsize for x in inputs)
                      + n_edges * pad_c * 4)
    ce = pl.CostEstimate(flops=int(flops), transcendentals=int(transcendentals),
                         bytes_accessed=int(bytes_accessed))

    # Single invocation (empty grid): every operand fits in VMEM with >100x headroom at
    # these shapes, so the whole forward runs resident with one launch and one output store.
    # TODO(synk): at large N/NE, tile edge rows (and node rows) with a ('parallel', ...)
    #             grid so both v7x TensorCores are used and the 64 MiB VMEM limit is
    #             respected; on v6e prefer bigger resident tiles (raise vmem_limit_bytes).
    padded = pl.pallas_call(
        kernel,
        out_shape=jax.ShapeDtypeStruct((n_edges, pad_c), jnp.float32),
        compiler_params=pltpu.CompilerParams(vmem_limit_bytes=48 * 1024 * 1024),
        cost_estimate=ce,
    )(*inputs)
    return padded[:, :n_classes]


# ----------------------------------------------------------------------------
# Main
# ----------------------------------------------------------------------------
if __name__ == "__main__":
    IN_DIM_NODE = 1024   # fixed by the module
    HIDDEN_DIM = 32
    OUT_DIM = 32
    N_LAYERS = 2
    N_CLASSES = 2
    N_NODES = 16
    N_EDGES = 32

    root = jax.random.PRNGKey(0)
    k_feat, k_src, k_dst, k_params = jax.random.split(root, 4)

    node_feat = jax.random.normal(k_feat, (N_NODES, IN_DIM_NODE), jnp.float32)
    src = jax.random.randint(k_src, (N_EDGES,), 0, N_NODES, dtype=jnp.int32)
    dst = jax.random.randint(k_dst, (N_EDGES,), 0, N_NODES, dtype=jnp.int32)

    params = make_params(k_params, IN_DIM_NODE, HIDDEN_DIM, OUT_DIM, N_LAYERS, N_CLASSES)

    edge_logits = edge_predict_forward(params, node_feat, src, dst, N_NODES)
    edge_logits = jax.block_until_ready(edge_logits)

    assert edge_logits.shape == (N_EDGES, N_CLASSES), edge_logits.shape
    assert edge_logits.dtype == jnp.float32
    assert bool(jnp.all(jnp.isfinite(edge_logits)))
    print("KERNEL_OK")
</pallas_src>

<mosaic_0001>
module attributes {stable_mosaic.version = 11 : i64} {
  func.func @_fused_edge_predict_kernel(%arg0: memref<32x1xi32, #tpu.memory_space<vmem>>, %arg1: memref<32x1xi32, #tpu.memory_space<vmem>>, %arg2: memref<16x1024xbf16, #tpu.memory_space<vmem>>, %arg3: memref<16x16xbf16, #tpu.memory_space<vmem>>, %arg4: memref<16x1xf32, #tpu.memory_space<vmem>>, %arg5: memref<1024x32xbf16, #tpu.memory_space<vmem>>, %arg6: memref<1x32xf32, #tpu.memory_space<vmem>>, %arg7: memref<32x32xbf16, #tpu.memory_space<vmem>>, %arg8: memref<32x32xbf16, #tpu.memory_space<vmem>>, %arg9: memref<1x32xf32, #tpu.memory_space<vmem>>, %arg10: memref<1x32xf32, #tpu.memory_space<vmem>>, %arg11: memref<1x32xf32, #tpu.memory_space<vmem>>, %arg12: memref<32x32xbf16, #tpu.memory_space<vmem>>, %arg13: memref<32x32xbf16, #tpu.memory_space<vmem>>, %arg14: memref<1x32xf32, #tpu.memory_space<vmem>>, %arg15: memref<1x32xf32, #tpu.memory_space<vmem>>, %arg16: memref<1x32xf32, #tpu.memory_space<vmem>>, %arg17: memref<32x32xbf16, #tpu.memory_space<vmem>>, %arg18: memref<32x32xbf16, #tpu.memory_space<vmem>>, %arg19: memref<1x32xf32, #tpu.memory_space<vmem>>, %arg20: memref<32x16xbf16, #tpu.memory_space<vmem>>, %arg21: memref<1x16xf32, #tpu.memory_space<vmem>>, %arg22: memref<16x128xbf16, #tpu.memory_space<vmem>>, %arg23: memref<1x128xf32, #tpu.memory_space<vmem>>, %arg24: memref<32x128xf32, #tpu.memory_space<vmem>>) attributes {dimension_semantics = [], scalar_prefetch = 0 : i64, scratch_operands = 0 : i64, tpu.core_type = #tpu.core_type<tc>} {
    %c0 = arith.constant 0 : index
    %c0_0 = arith.constant 0 : index
    %0 = vector.load %arg2[%c0, %c0_0] : memref<16x1024xbf16, #tpu.memory_space<vmem>>, vector<16x1024xbf16>
    %c0_1 = arith.constant 0 : index
    %c0_2 = arith.constant 0 : index
    %1 = vector.load %arg5[%c0_1, %c0_2] : memref<1024x32xbf16, #tpu.memory_space<vmem>>, vector<1024x32xbf16>
    %cst = arith.constant dense<0.000000e+00> : vector<16x32xf32>
    %2 = tpu.matmul %0, %1, %cst {dimension_numbers = #tpu.dot_dimension_numbers<[1], [0], [0], [1], [0, 0, 1, 1], [], []>} : vector<16x1024xbf16>, vector<1024x32xbf16>, vector<16x32xf32> -> vector<16x32xf32>
    %c0_3 = arith.constant 0 : index
    %c0_4 = arith.constant 0 : index
    %3 = vector.load %arg6[%c0_3, %c0_4] : memref<1x32xf32, #tpu.memory_space<vmem>>, vector<1x32xf32>
    %4 = vector.broadcast %3 : vector<1x32xf32> to vector<16x32xf32>
    %5 = arith.addf %2, %4 : vector<16x32xf32>
    %c0_5 = arith.constant 0 : index
    %c0_6 = arith.constant 0 : index
    %6 = vector.load %arg3[%c0_5, %c0_6] : memref<16x16xbf16, #tpu.memory_space<vmem>>, vector<16x16xbf16>
    %c0_7 = arith.constant 0 : index
    %c0_8 = arith.constant 0 : index
    %7 = vector.load %arg4[%c0_7, %c0_8] : memref<16x1xf32, #tpu.memory_space<vmem>>, vector<16x1xf32>
    %8 = arith.truncf %5 : vector<16x32xf32> to vector<16x32xbf16>
    %cst_9 = arith.constant dense<0.000000e+00> : vector<16x32xf32>
    %9 = tpu.matmul %6, %8, %cst_9 {dimension_numbers = #tpu.dot_dimension_numbers<[1], [0], [0], [1], [0, 0, 1, 1], [], []>} : vector<16x16xbf16>, vector<16x32xbf16>, vector<16x32xf32> -> vector<16x32xf32>
    %10 = vector.broadcast %7 : vector<16x1xf32> to vector<16x32xf32>
    %11 = arith.mulf %9, %10 : vector<16x32xf32>
    %c0_10 = arith.constant 0 : index
    %c0_11 = arith.constant 0 : index
    %12 = vector.load %arg7[%c0_10, %c0_11] : memref<32x32xbf16, #tpu.memory_space<vmem>>, vector<32x32xbf16>
    %cst_12 = arith.constant dense<0.000000e+00> : vector<16x32xf32>
    %13 = tpu.matmul %8, %12, %cst_12 {dimension_numbers = #tpu.dot_dimension_numbers<[1], [0], [0], [1], [0, 0, 1, 1], [], []>} : vector<16x32xbf16>, vector<32x32xbf16>, vector<16x32xf32> -> vector<16x32xf32>
    %14 = arith.truncf %11 : vector<16x32xf32> to vector<16x32xbf16>
    %c0_13 = arith.constant 0 : index
    %c0_14 = arith.constant 0 : index
    %15 = vector.load %arg8[%c0_13, %c0_14] : memref<32x32xbf16, #tpu.memory_space<vmem>>, vector<32x32xbf16>
    %cst_15 = arith.constant dense<0.000000e+00> : vector<16x32xf32>
    %16 = tpu.matmul %14, %15, %cst_15 {dimension_numbers = #tpu.dot_dimension_numbers<[1], [0], [0], [1], [0, 0, 1, 1], [], []>} : vector<16x32xbf16>, vector<32x32xbf16>, vector<16x32xf32> -> vector<16x32xf32>
    %17 = arith.addf %13, %16 : vector<16x32xf32>
    %c0_16 = arith.constant 0 : index
    %c0_17 = arith.constant 0 : index
    %18 = vector.load %arg9[%c0_16, %c0_17] : memref<1x32xf32, #tpu.memory_space<vmem>>, vector<1x32xf32>
    %19 = vector.broadcast %18 : vector<1x32xf32> to vector<16x32xf32>
    %20 = arith.addf %17, %19 : vector<16x32xf32>
    %21 = arith.mulf %20, %20 : vector<16x32xf32>
    %cst_18 = arith.constant dense<0.000000e+00> : vector<16xf32>
    %22 = vector.multi_reduction <add>, %21, %cst_18 [1] : vector<16x32xf32> to vector<16xf32>
    %23 = vector.shape_cast %22 : vector<16xf32> to vector<16x1xf32>
    %cst_19 = arith.constant 1.000000e-24 : f32
    %24 = vector.broadcast %cst_19 : f32 to vector<16x1xf32>
    %25 = arith.maximumf %23, %24 : vector<16x1xf32>
    %26 = math.rsqrt %25 : vector<16x1xf32>
    %27 = vector.broadcast %26 : vector<16x1xf32> to vector<16x32xf32>
    %28 = arith.mulf %20, %27 : vector<16x32xf32>
    %cst_20 = arith.constant 0.000000e+00 : f32
    %29 = vector.broadcast %cst_20 : f32 to vector<16x32xf32>
    %30 = arith.maximumf %28, %29 : vector<16x32xf32>
    %c0_21 = arith.constant 0 : index
    %c0_22 = arith.constant 0 : index
    %31 = vector.load %arg10[%c0_21, %c0_22] : memref<1x32xf32, #tpu.memory_space<vmem>>, vector<1x32xf32>
    %32 = vector.broadcast %31 : vector<1x32xf32> to vector<16x32xf32>
    %33 = arith.mulf %30, %32 : vector<16x32xf32>
    %c0_23 = arith.constant 0 : index
    %c0_24 = arith.constant 0 : index
    %34 = vector.load %arg11[%c0_23, %c0_24] : memref<1x32xf32, #tpu.memory_space<vmem>>, vector<1x32xf32>
    %35 = vector.broadcast %34 : vector<1x32xf32> to vector<16x32xf32>
    %36 = arith.addf %33, %35 : vector<16x32xf32>
    %37 = arith.addf %36, %5 : vector<16x32xf32>
    %38 = arith.truncf %37 : vector<16x32xf32> to vector<16x32xbf16>
    %cst_25 = arith.constant dense<0.000000e+00> : vector<16x32xf32>
    %39 = tpu.matmul %6, %38, %cst_25 {dimension_numbers = #tpu.dot_dimension_numbers<[1], [0], [0], [1], [0, 0, 1, 1], [], []>} : vector<16x16xbf16>, vector<16x32xbf16>, vector<16x32xf32> -> vector<16x32xf32>
    %40 = vector.broadcast %7 : vector<16x1xf32> to vector<16x32xf32>
    %41 = arith.mulf %39, %40 : vector<16x32xf32>
    %c0_26 = arith.constant 0 : index
    %c0_27 = arith.constant 0 : index
    %42 = vector.load %arg12[%c0_26, %c0_27] : memref<32x32xbf16, #tpu.memory_space<vmem>>, vector<32x32xbf16>
    %cst_28 = arith.constant dense<0.000000e+00> : vector<16x32xf32>
    %43 = tpu.matmul %38, %42, %cst_28 {dimension_numbers = #tpu.dot_dimension_numbers<[1], [0], [0], [1], [0, 0, 1, 1], [], []>} : vector<16x32xbf16>, vector<32x32xbf16>, vector<16x32xf32> -> vector<16x32xf32>
    %44 = arith.truncf %41 : vector<16x32xf32> to vector<16x32xbf16>
    %c0_29 = arith.constant 0 : index
    %c0_30 = arith.constant 0 : index
    %45 = vector.load %arg13[%c0_29, %c0_30] : memref<32x32xbf16, #tpu.memory_space<vmem>>, vector<32x32xbf16>
    %cst_31 = arith.constant dense<0.000000e+00> : vector<16x32xf32>
    %46 = tpu.matmul %44, %45, %cst_31 {dimension_numbers = #tpu.dot_dimension_numbers<[1], [0], [0], [1], [0, 0, 1, 1], [], []>} : vector<16x32xbf16>, vector<32x32xbf16>, vector<16x32xf32> -> vector<16x32xf32>
    %47 = arith.addf %43, %46 : vector<16x32xf32>
    %c0_32 = arith.constant 0 : index
    %c0_33 = arith.constant 0 : index
    %48 = vector.load %arg14[%c0_32, %c0_33] : memref<1x32xf32, #tpu.memory_space<vmem>>, vector<1x32xf32>
    %49 = vector.broadcast %48 : vector<1x32xf32> to vector<16x32xf32>
    %50 = arith.addf %47, %49 : vector<16x32xf32>
    %51 = arith.mulf %50, %50 : vector<16x32xf32>
    %cst_34 = arith.constant dense<0.000000e+00> : vector<16xf32>
    %52 = vector.multi_reduction <add>, %51, %cst_34 [1] : vector<16x32xf32> to vector<16xf32>
    %53 = vector.shape_cast %52 : vector<16xf32> to vector<16x1xf32>
    %cst_35 = arith.constant 1.000000e-24 : f32
    %54 = vector.broadcast %cst_35 : f32 to vector<16x1xf32>
    %55 = arith.maximumf %53, %54 : vector<16x1xf32>
    %56 = math.rsqrt %55 : vector<16x1xf32>
    %57 = vector.broadcast %56 : vector<16x1xf32> to vector<16x32xf32>
    %58 = arith.mulf %50, %57 : vector<16x32xf32>
    %cst_36 = arith.constant 0.000000e+00 : f32
    %59 = vector.broadcast %cst_36 : f32 to vector<16x32xf32>
    %60 = arith.maximumf %58, %59 : vector<16x32xf32>
    %c0_37 = arith.constant 0 : index
    %c0_38 = arith.constant 0 : index
    %61 = vector.load %arg15[%c0_37, %c0_38] : memref<1x32xf32, #tpu.memory_space<vmem>>, vector<1x32xf32>
    %62 = vector.broadcast %61 : vector<1x32xf32> to vector<16x32xf32>
    %63 = arith.mulf %60, %62 : vector<16x32xf32>
    %c0_39 = arith.constant 0 : index
    %c0_40 = arith.constant 0 : index
    %64 = vector.load %arg16[%c0_39, %c0_40] : memref<1x32xf32, #tpu.memory_space<vmem>>, vector<1x32xf32>
    %65 = vector.broadcast %64 : vector<1x32xf32> to vector<16x32xf32>
    %66 = arith.addf %63, %65 : vector<16x32xf32>
    %67 = arith.addf %66, %37 : vector<16x32xf32>
    %68 = tpu.iota {dimensions = array<i32: 1>} : vector<32x16xi32>
    %c0_41 = arith.constant 0 : index
    %c0_42 = arith.constant 0 : index
    %69 = vector.load %arg0[%c0_41, %c0_42] : memref<32x1xi32, #tpu.memory_space<vmem>>, vector<32x1xi32>
    %70 = vector.broadcast %69 : vector<32x1xi32> to vector<32x16xi32>
    %71 = arith.cmpi eq, %68, %70 : vector<32x16xi32>
    %72 = arith.extui %71 : vector<32x16xi1> to vector<32x16xi32>
    %73 = arith.sitofp %72 : vector<32x16xi32> to vector<32x16xf32>
    %74 = arith.truncf %73 : vector<32x16xf32> to vector<32x16xbf16>
    %c0_43 = arith.constant 0 : index
    %c0_44 = arith.constant 0 : index
    %75 = vector.load %arg1[%c0_43, %c0_44] : memref<32x1xi32, #tpu.memory_space<vmem>>, vector<32x1xi32>
    %76 = vector.broadcast %75 : vector<32x1xi32> to vector<32x16xi32>
    %77 = arith.cmpi eq, %68, %76 : vector<32x16xi32>
    %78 = arith.extui %77 : vector<32x16xi1> to vector<32x16xi32>
    %79 = arith.sitofp %78 : vector<32x16xi32> to vector<32x16xf32>
    %80 = arith.truncf %79 : vector<32x16xf32> to vector<32x16xbf16>
    %81 = arith.truncf %67 : vector<16x32xf32> to vector<16x32xbf16>
    %c0_45 = arith.constant 0 : index
    %c0_46 = arith.constant 0 : index
    %82 = vector.load %arg17[%c0_45, %c0_46] : memref<32x32xbf16, #tpu.memory_space<vmem>>, vector<32x32xbf16>
    %cst_47 = arith.constant dense<0.000000e+00> : vector<16x32xf32>
    %83 = tpu.matmul %81, %82, %cst_47 {dimension_numbers = #tpu.dot_dimension_numbers<[1], [0], [0], [1], [0, 0, 1, 1], [], []>} : vector<16x32xbf16>, vector<32x32xbf16>, vector<16x32xf32> -> vector<16x32xf32>
    %84 = arith.truncf %83 : vector<16x32xf32> to vector<16x32xbf16>
    %c0_48 = arith.constant 0 : index
    %c0_49 = arith.constant 0 : index
    %85 = vector.load %arg18[%c0_48, %c0_49] : memref<32x32xbf16, #tpu.memory_space<vmem>>, vector<32x32xbf16>
    %cst_50 = arith.constant dense<0.000000e+00> : vector<16x32xf32>
    %86 = tpu.matmul %81, %85, %cst_50 {dimension_numbers = #tpu.dot_dimension_numbers<[1], [0], [0], [1], [0, 0, 1, 1], [], []>} : vector<16x32xbf16>, vector<32x32xbf16>, vector<16x32xf32> -> vector<16x32xf32>
    %87 = arith.truncf %86 : vector<16x32xf32> to vector<16x32xbf16>
    %cst_51 = arith.constant dense<0.000000e+00> : vector<32x32xf32>
    %88 = tpu.matmul %74, %84, %cst_51 {dimension_numbers = #tpu.dot_dimension_numbers<[1], [0], [0], [1], [0, 0, 1, 1], [], []>} : vector<32x16xbf16>, vector<16x32xbf16>, vector<32x32xf32> -> vector<32x32xf32>
    %cst_52 = arith.constant dense<0.000000e+00> : vector<32x32xf32>
    %89 = tpu.matmul %80, %87, %cst_52 {dimension_numbers = #tpu.dot_dimension_numbers<[1], [0], [0], [1], [0, 0, 1, 1], [], []>} : vector<32x16xbf16>, vector<16x32xbf16>, vector<32x32xf32> -> vector<32x32xf32>
    %90 = arith.addf %88, %89 : vector<32x32xf32>
    %c0_53 = arith.constant 0 : index
    %c0_54 = arith.constant 0 : index
    %91 = vector.load %arg19[%c0_53, %c0_54] : memref<1x32xf32, #tpu.memory_space<vmem>>, vector<1x32xf32>
    %92 = vector.broadcast %91 : vector<1x32xf32> to vector<32x32xf32>
    %93 = arith.addf %90, %92 : vector<32x32xf32>
    %cst_55 = arith.constant 0.000000e+00 : f32
    %94 = vector.broadcast %cst_55 : f32 to vector<32x32xf32>
    %95 = arith.maximumf %93, %94 : vector<32x32xf32>
    %96 = arith.truncf %95 : vector<32x32xf32> to vector<32x32xbf16>
    %c0_56 = arith.constant 0 : index
    %c0_57 = arith.constant 0 : index
    %97 = vector.load %arg20[%c0_56, %c0_57] : memref<32x16xbf16, #tpu.memory_space<vmem>>, vector<32x16xbf16>
    %cst_58 = arith.constant dense<0.000000e+00> : vector<32x16xf32>
    %98 = tpu.matmul %96, %97, %cst_58 {dimension_numbers = #tpu.dot_dimension_numbers<[1], [0], [0], [1], [0, 0, 1, 1], [], []>} : vector<32x32xbf16>, vector<32x16xbf16>, vector<32x16xf32> -> vector<32x16xf32>
    %c0_59 = arith.constant 0 : index
    %c0_60 = arith.constant 0 : index
    %99 = vector.load %arg21[%c0_59, %c0_60] : memref<1x16xf32, #tpu.memory_space<vmem>>, vector<1x16xf32>
    %100 = vector.broadcast %99 : vector<1x16xf32> to vector<32x16xf32>
    %101 = arith.addf %98, %100 : vector<32x16xf32>
    %cst_61 = arith.constant 0.000000e+00 : f32
    %102 = vector.broadcast %cst_61 : f32 to vector<32x16xf32>
    %103 = arith.maximumf %101, %102 : vector<32x16xf32>
    %104 = arith.truncf %103 : vector<32x16xf32> to vector<32x16xbf16>
    %c0_62 = arith.constant 0 : index
    %c0_63 = arith.constant 0 : index
    %105 = vector.load %arg22[%c0_62, %c0_63] : memref<16x128xbf16, #tpu.memory_space<vmem>>, vector<16x128xbf16>
    %cst_64 = arith.constant dense<0.000000e+00> : vector<32x128xf32>
    %106 = tpu.matmul %104, %105, %cst_64 {dimension_numbers = #tpu.dot_dimension_numbers<[1], [0], [0], [1], [0, 0, 1, 1], [], []>} : vector<32x16xbf16>, vector<16x128xbf16>, vector<32x128xf32> -> vector<32x128xf32>
    %c0_65 = arith.constant 0 : index
    %c0_66 = arith.constant 0 : index
    %107 = vector.load %arg23[%c0_65, %c0_66] : memref<1x128xf32, #tpu.memory_space<vmem>>, vector<1x128xf32>
    %108 = vector.broadcast %107 : vector<1x128xf32> to vector<32x128xf32>
    %109 = arith.addf %106, %108 : vector<32x128xf32>
    %c0_67 = arith.constant 0 : index
    %c0_68 = arith.constant 0 : index
    %110 = vector.load %arg24[%c0_67, %c0_68] : memref<32x128xf32, #tpu.memory_space<vmem>>, vector<32x128xf32>
    tpu.vector_store %arg24[%c0_67, %c0_68], %109 {strides = array<i32>} : memref<32x128xf32, #tpu.memory_space<vmem>>, vector<32x128xf32>,
    return
  }
}

</mosaic_0001>

<llo_original>
// kernel: tpu_custom_call.1
$region0: #{tpu_custom_call.1}
  #allocation0 [shape = 'u32[]', space=smem, size = 0x4, offset = 0x4, fixed_abs, tag = 'smem constant byte address 0x4 - core index']
  #allocation1 [shape = 'u32[144,128]{1,0:T(1,128)}', space=vmem, size = 0x12000, scoped, tag = 'internal scratch']
  %s0 = inlined_call_operand.vmem [shape: s32[32,1], index: 0, kind: input, shape index: {}]
  %s1 = inlined_call_operand.vmem [shape: s32[32,1], index: 1, kind: input, shape index: {}]
  %s2 = inlined_call_operand.vmem [shape: bf16[16,1024], index: 2, kind: input, shape index: {}]
  %s3 = inlined_call_operand.vmem [shape: bf16[16,16], index: 3, kind: input, shape index: {}]
  %s4 = inlined_call_operand.vmem [shape: f32[16,1], index: 4, kind: input, shape index: {}]
  %s5 = inlined_call_operand.vmem [shape: bf16[1024,32], index: 5, kind: input, shape index: {}]
  %s6 = inlined_call_operand.vmem [shape: f32[1,32], index: 6, kind: input, shape index: {}]
  %s7 = inlined_call_operand.vmem [shape: bf16[32,32], index: 7, kind: input, shape index: {}]
  %s8 = inlined_call_operand.vmem [shape: bf16[32,32], index: 8, kind: input, shape index: {}]
  %s9 = inlined_call_operand.vmem [shape: f32[1,32], index: 9, kind: input, shape index: {}]
  %s10 = inlined_call_operand.vmem [shape: f32[1,32], index: 10, kind: input, shape index: {}]
  %s11 = inlined_call_operand.vmem [shape: f32[1,32], index: 11, kind: input, shape index: {}]
  %s12 = inlined_call_operand.vmem [shape: bf16[32,32], index: 12, kind: input, shape index: {}]
  %s13 = inlined_call_operand.vmem [shape: bf16[32,32], index: 13, kind: input, shape index: {}]
  %s14 = inlined_call_operand.vmem [shape: f32[1,32], index: 14, kind: input, shape index: {}]
  %s15 = inlined_call_operand.vmem [shape: f32[1,32], index: 15, kind: input, shape index: {}]
  %s16 = inlined_call_operand.vmem [shape: f32[1,32], index: 16, kind: input, shape index: {}]
  %s17 = inlined_call_operand.vmem [shape: bf16[32,32], index: 17, kind: input, shape index: {}]
  %s18 = inlined_call_operand.vmem [shape: bf16[32,32], index: 18, kind: input, shape index: {}]
  %s19 = inlined_call_operand.vmem [shape: f32[1,32], index: 19, kind: input, shape index: {}]
  %s20 = inlined_call_operand.vmem [shape: bf16[32,16], index: 20, kind: input, shape index: {}]
  %s21 = inlined_call_operand.vmem [shape: f32[1,16], index: 21, kind: input, shape index: {}]
  %s22 = inlined_call_operand.vmem [shape: bf16[16,128], index: 22, kind: input, shape index: {}]
  %s23 = inlined_call_operand.vmem [shape: f32[1,128], index: 23, kind: input, shape index: {}]
  %s24 = inlined_call_operand.hbm [shape: f32[32,128], index: 24, kind: output, shape index: {}]
  %s25 = sld [smem:[#allocation0]]
  $region106: #{tpu_custom_call.1} parent=0
    _
  %s27 = ssub.s32 1, %s25
  %s28 = scalar_select 0, %s27, %s25
  $region1: #{tpu_custom_call.1} parent=0
    #allocation2 [shape = 'u8[16384]{0}', space=vmem, size = 0x4000, scoped, tag = 'output window, operand 0, single buffered']
    #allocation3 [shape = 's32[1]{0}', space=sflag, size = 0x4, scoped, tag = 'scoped memory for tpu_custom_call.1']
    %29 = vsyncpa [#allocation3], 0
    // Predicated region
    $region2: #{tpu_custom_call.1} parent=1 // pred_check
      _
    $region3: #{tpu_custom_call.1} parent=1 // pred_check_branch
      %31 = sbr.rel (0) target = $region5
    $region4: #{tpu_custom_call.1} parent=1 // pred_region
      _
    $region5: #{tpu_custom_call.1} parent=1 // pred_fallthru
      _
    // Predicated region
    $region6: #{tpu_custom_call.1} parent=1 // pred_check
      _
    $region7: #{tpu_custom_call.1} parent=1 // pred_check_branch
      %33 = sbr.rel (0) target = $region9
    $region8: #{tpu_custom_call.1} parent=1 // pred_region
      _
    $region9: #{tpu_custom_call.1} parent=1 // pred_fallthru
      _
    // Predicated region
    $region10: #{tpu_custom_call.1} parent=1 // pred_check
      _
    $region11: #{tpu_custom_call.1} parent=1 // pred_check_branch
      %35 = sbr.rel (0) target = $region13
    $region12: #{tpu_custom_call.1} parent=1 // pred_region
      _
    $region13: #{tpu_custom_call.1} parent=1 // pred_fallthru
      _
    // Predicated region
    $region14: #{tpu_custom_call.1} parent=1 // pred_check
      _
    $region15: #{tpu_custom_call.1} parent=1 // pred_check_branch
      %37 = sbr.rel (0) target = $region17
    $region16: #{tpu_custom_call.1} parent=1 // pred_region
      _
    $region17: #{tpu_custom_call.1} parent=1 // pred_fallthru
      _
    // Predicated region
    $region18: #{tpu_custom_call.1} parent=1 // pred_check
      _
    $region19: #{tpu_custom_call.1} parent=1 // pred_check_branch
      %39 = sbr.rel (0) target = $region21
    $region20: #{tpu_custom_call.1} parent=1 // pred_region
      _
    $region21: #{tpu_custom_call.1} parent=1 // pred_fallthru
      _
    // Predicated region
    $region22: #{tpu_custom_call.1} parent=1 // pred_check
      _
    $region23: #{tpu_custom_call.1} parent=1 // pred_check_branch
      %41 = sbr.rel (0) target = $region25
    $region24: #{tpu_custom_call.1} parent=1 // pred_region
      _
    $region25: #{tpu_custom_call.1} parent=1 // pred_fallthru
      _
    // Predicated region
    $region26: #{tpu_custom_call.1} parent=1 // pred_check
      _
    $region27: #{tpu_custom_call.1} parent=1 // pred_check_branch
      %43 = sbr.rel (0) target = $region29
    $region28: #{tpu_custom_call.1} parent=1 // pred_region
      _
    $region29: #{tpu_custom_call.1} parent=1 // pred_fallthru
      _
    // Predicated region
    $region30: #{tpu_custom_call.1} parent=1 // pred_check
      _
    $region31: #{tpu_custom_call.1} parent=1 // pred_check_branch
      %45 = sbr.rel (0) target = $region33
    $region32: #{tpu_custom_call.1} parent=1 // pred_region
      _
    $region33: #{tpu_custom_call.1} parent=1 // pred_fallthru
      _
    // Predicated region
    $region34: #{tpu_custom_call.1} parent=1 // pred_check
      _
    $region35: #{tpu_custom_call.1} parent=1 // pred_check_branch
      %47 = sbr.rel (0) target = $region37
    $region36: #{tpu_custom_call.1} parent=1 // pred_region
      _
    $region37: #{tpu_custom_call.1} parent=1 // pred_fallthru
      _
    // Predicated region
    $region38: #{tpu_custom_call.1} parent=1 // pred_check
      _
    $region39: #{tpu_custom_call.1} parent=1 // pred_check_branch
      %49 = sbr.rel (0) target = $region41
    $region40: #{tpu_custom_call.1} parent=1 // pred_region
      _
    $region41: #{tpu_custom_call.1} parent=1 // pred_fallthru
      _
    // Predicated region
    $region42: #{tpu_custom_call.1} parent=1 // pred_check
      _
    $region43: #{tpu_custom_call.1} parent=1 // pred_check_branch
      %51 = sbr.rel (0) target = $region45
    $region44: #{tpu_custom_call.1} parent=1 // pred_region
      _
    $region45: #{tpu_custom_call.1} parent=1 // pred_fallthru
      _
    // Predicated region
    $region46: #{tpu_custom_call.1} parent=1 // pred_check
      _
    $region47: #{tpu_custom_call.1} parent=1 // pred_check_branch
      %53 = sbr.rel (0) target = $region49
    $region48: #{tpu_custom_call.1} parent=1 // pred_region
      _
    $region49: #{tpu_custom_call.1} parent=1 // pred_fallthru
      _
    // Predicated region
    $region50: #{tpu_custom_call.1} parent=1 // pred_check
      _
    $region51: #{tpu_custom_call.1} parent=1 // pred_check_branch
      %55 = sbr.rel (0) target = $region53
    $region52: #{tpu_custom_call.1} parent=1 // pred_region
      _
    $region53: #{tpu_custom_call.1} parent=1 // pred_fallthru
      _
    // Predicated region
    $region54: #{tpu_custom_call.1} parent=1 // pred_check
      _
    $region55: #{tpu_custom_call.1} parent=1 // pred_check_branch
      %57 = sbr.rel (0) target = $region57
    $region56: #{tpu_custom_call.1} parent=1 // pred_region
      _
    $region57: #{tpu_custom_call.1} parent=1 // pred_fallthru
      _
    // Predicated region
    $region58: #{tpu_custom_call.1} parent=1 // pred_check
      _
    $region59: #{tpu_custom_call.1} parent=1 // pred_check_branch
      %59 = sbr.rel (0) target = $region61
    $region60: #{tpu_custom_call.1} parent=1 // pred_region
      _
    $region61: #{tpu_custom_call.1} parent=1 // pred_fallthru
      _
    // Predicated region
    $region62: #{tpu_custom_call.1} parent=1 // pred_check
      _
    $region63: #{tpu_custom_call.1} parent=1 // pred_check_branch
      %61 = sbr.rel (0) target = $region65
    $region64: #{tpu_custom_call.1} parent=1 // pred_region
      _
    $region65: #{tpu_custom_call.1} parent=1 // pred_fallthru
      _
    // Predicated region
    $region66: #{tpu_custom_call.1} parent=1 // pred_check
      _
    $region67: #{tpu_custom_call.1} parent=1 // pred_check_branch
      %63 = sbr.rel (0) target = $region69
    $region68: #{tpu_custom_call.1} parent=1 // pred_region
      _
    $region69: #{tpu_custom_call.1} parent=1 // pred_fallthru
      _
    // Predicated region
    $region70: #{tpu_custom_call.1} parent=1 // pred_check
      _
    $region71: #{tpu_custom_call.1} parent=1 // pred_check_branch
      %65 = sbr.rel (0) target = $region73
    $region72: #{tpu_custom_call.1} parent=1 // pred_region
      _
    $region73: #{tpu_custom_call.1} parent=1 // pred_fallthru
      _
    // Predicated region
    $region74: #{tpu_custom_call.1} parent=1 // pred_check
      _
    $region75: #{tpu_custom_call.1} parent=1 // pred_check_branch
      %67 = sbr.rel (0) target = $region77
    $region76: #{tpu_custom_call.1} parent=1 // pred_region
      _
    $region77: #{tpu_custom_call.1} parent=1 // pred_fallthru
      _
    // Predicated region
    $region78: #{tpu_custom_call.1} parent=1 // pred_check
      _
    $region79: #{tpu_custom_call.1} parent=1 // pred_check_branch
      %69 = sbr.rel (0) target = $region81
    $region80: #{tpu_custom_call.1} parent=1 // pred_region
      _
    $region81: #{tpu_custom_call.1} parent=1 // pred_fallthru
      _
    // Predicated region
    $region82: #{tpu_custom_call.1} parent=1 // pred_check
      _
    $region83: #{tpu_custom_call.1} parent=1 // pred_check_branch
      %71 = sbr.rel (0) target = $region85
    $region84: #{tpu_custom_call.1} parent=1 // pred_region
      _
    $region85: #{tpu_custom_call.1} parent=1 // pred_fallthru
      _
    // Predicated region
    $region86: #{tpu_custom_call.1} parent=1 // pred_check
      _
    $region87: #{tpu_custom_call.1} parent=1 // pred_check_branch
      %73 = sbr.rel (0) target = $region89
    $region88: #{tpu_custom_call.1} parent=1 // pred_region
      _
    $region89: #{tpu_custom_call.1} parent=1 // pred_fallthru
      _
    // Predicated region
    $region90: #{tpu_custom_call.1} parent=1 // pred_check
      _
    $region91: #{tpu_custom_call.1} parent=1 // pred_check_branch
      %75 = sbr.rel (0) target = $region93
    $region92: #{tpu_custom_call.1} parent=1 // pred_region
      _
    $region93: #{tpu_custom_call.1} parent=1 // pred_fallthru
      _
    // Predicated region
    $region94: #{tpu_custom_call.1} parent=1 // pred_check
      _
    $region95: #{tpu_custom_call.1} parent=1 // pred_check_branch
      %77 = sbr.rel (0) target = $region97
    $region96: #{tpu_custom_call.1} parent=1 // pred_region
      _
    $region97: #{tpu_custom_call.1} parent=1 // pred_fallthru
      _
    %v79 = vld [vmem:[%s2] sm:$0xff]
    %v80 = vld [vmem:[%s2 + $0x8] sm:$0xff]
    %v81 = vld [vmem:[%s2 + $0x10] sm:$0xff]
    %v82 = vld [vmem:[%s2 + $0x18] sm:$0xff]
    %v83 = vld [vmem:[%s2 + $0x20] sm:$0xff]
    %v84 = vld [vmem:[%s2 + $0x28] sm:$0xff]
    %v85 = vld [vmem:[%s2 + $0x30] sm:$0xff]
    %v86 = vld [vmem:[%s2 + $0x38] sm:$0xff]
    %v87 = vld [vmem:[%s5] sm:$0xf]
    %v88 = vld [vmem:[%s5 + $0x4] sm:$0xf]
    %v89 = vld [vmem:[%s5 + $0x8] sm:$0xf]
    %v90 = vld [vmem:[%s5 + $0xc] sm:$0xf]
    %v91 = vld [vmem:[%s5 + $0x10] sm:$0xf]
    %v92 = vld [vmem:[%s5 + $0x14] sm:$0xf]
    %v93 = vld [vmem:[%s5 + $0x18] sm:$0xf]
    %v94 = vld [vmem:[%s5 + $0x1c] sm:$0xf]
    %v95 = vld [vmem:[%s5 + $0x20] sm:$0xf]
    %v96 = vld [vmem:[%s5 + $0x24] sm:$0xf]
    %v97 = vld [vmem:[%s5 + $0x28] sm:$0xf]
    %v98 = vld [vmem:[%s5 + $0x2c] sm:$0xf]
    %v99 = vld [vmem:[%s5 + $0x30] sm:$0xf]
    %v100 = vld [vmem:[%s5 + $0x34] sm:$0xf]
    %v101 = vld [vmem:[%s5 + $0x38] sm:$0xf]
    %v102 = vld [vmem:[%s5 + $0x3c] sm:$0xf]
    %v103 = vld [vmem:[%s5 + $0x40] sm:$0xf]
    %v104 = vld [vmem:[%s5 + $0x44] sm:$0xf]
    %v105 = vld [vmem:[%s5 + $0x48] sm:$0xf]
    %v106 = vld [vmem:[%s5 + $0x4c] sm:$0xf]
    %v107 = vld [vmem:[%s5 + $0x50] sm:$0xf]
    %v108 = vld [vmem:[%s5 + $0x54] sm:$0xf]
    %v109 = vld [vmem:[%s5 + $0x58] sm:$0xf]
    %v110 = vld [vmem:[%s5 + $0x5c] sm:$0xf]
    %v111 = vld [vmem:[%s5 + $0x60] sm:$0xf]
    %v112 = vld [vmem:[%s5 + $0x64] sm:$0xf]
    %v113 = vld [vmem:[%s5 + $0x68] sm:$0xf]
    %v114 = vld [vmem:[%s5 + $0x6c] sm:$0xf]
    %v115 = vld [vmem:[%s5 + $0x70] sm:$0xf]
    %v116 = vld [vmem:[%s5 + $0x74] sm:$0xf]
    %v117 = vld [vmem:[%s5 + $0x78] sm:$0xf]
    %v118 = vld [vmem:[%s5 + $0x7c] sm:$0xf]
    %v119 = vld [vmem:[%s5 + $0x80] sm:$0xf]
    %v120 = vld [vmem:[%s5 + $0x84] sm:$0xf]
    %v121 = vld [vmem:[%s5 + $0x88] sm:$0xf]
    %v122 = vld [vmem:[%s5 + $0x8c] sm:$0xf]
    %v123 = vld [vmem:[%s5 + $0x90] sm:$0xf]
    %v124 = vld [vmem:[%s5 + $0x94] sm:$0xf]
    %v125 = vld [vmem:[%s5 + $0x98] sm:$0xf]
    %v126 = vld [vmem:[%s5 + $0x9c] sm:$0xf]
    %v127 = vld [vmem:[%s5 + $0xa0] sm:$0xf]
    %v128 = vld [vmem:[%s5 + $0xa4] sm:$0xf]
    %v129 = vld [vmem:[%s5 + $0xa8] sm:$0xf]
    %v130 = vld [vmem:[%s5 + $0xac] sm:$0xf]
    %v131 = vld [vmem:[%s5 + $0xb0] sm:$0xf]
    %v132 = vld [vmem:[%s5 + $0xb4] sm:$0xf]
    %v133 = vld [vmem:[%s5 + $0xb8] sm:$0xf]
    %v134 = vld [vmem:[%s5 + $0xbc] sm:$0xf]
    %v135 = vld [vmem:[%s5 + $0xc0] sm:$0xf]
    %v136 = vld [vmem:[%s5 + $0xc4] sm:$0xf]
    %v137 = vld [vmem:[%s5 + $0xc8] sm:$0xf]
    %v138 = vld [vmem:[%s5 + $0xcc] sm:$0xf]
    %v139 = vld [vmem:[%s5 + $0xd0] sm:$0xf]
    %v140 = vld [vmem:[%s5 + $0xd4] sm:$0xf]
    %v141 = vld [vmem:[%s5 + $0xd8] sm:$0xf]
    %v142 = vld [vmem:[%s5 + $0xdc] sm:$0xf]
    %v143 = vld [vmem:[%s5 + $0xe0] sm:$0xf]
    %v144 = vld [vmem:[%s5 + $0xe4] sm:$0xf]
    %v145 = vld [vmem:[%s5 + $0xe8] sm:$0xf]
    %v146 = vld [vmem:[%s5 + $0xec] sm:$0xf]
    %v147 = vld [vmem:[%s5 + $0xf0] sm:$0xf]
    %v148 = vld [vmem:[%s5 + $0xf4] sm:$0xf]
    %v149 = vld [vmem:[%s5 + $0xf8] sm:$0xf]
    %v150 = vld [vmem:[%s5 + $0xfc] sm:$0xf]
    %v151 = vld [vmem:[%s5 + $0x100] sm:$0xf]
    %v152 = vld [vmem:[%s5 + $0x104] sm:$0xf]
    %v153 = vld [vmem:[%s5 + $0x108] sm:$0xf]
    %v154 = vld [vmem:[%s5 + $0x10c] sm:$0xf]
    %v155 = vld [vmem:[%s5 + $0x110] sm:$0xf]
    %v156 = vld [vmem:[%s5 + $0x114] sm:$0xf]
    %v157 = vld [vmem:[%s5 + $0x118] sm:$0xf]
    %v158 = vld [vmem:[%s5 + $0x11c] sm:$0xf]
    %v159 = vld [vmem:[%s5 + $0x120] sm:$0xf]
    %v160 = vld [vmem:[%s5 + $0x124] sm:$0xf]
    %v161 = vld [vmem:[%s5 + $0x128] sm:$0xf]
    %v162 = vld [vmem:[%s5 + $0x12c] sm:$0xf]
    %v163 = vld [vmem:[%s5 + $0x130] sm:$0xf]
    %v164 = vld [vmem:[%s5 + $0x134] sm:$0xf]
    %v165 = vld [vmem:[%s5 + $0x138] sm:$0xf]
    %v166 = vld [vmem:[%s5 + $0x13c] sm:$0xf]
    %v167 = vld [vmem:[%s5 + $0x140] sm:$0xf]
    %v168 = vld [vmem:[%s5 + $0x144] sm:$0xf]
    %v169 = vld [vmem:[%s5 + $0x148] sm:$0xf]
    %v170 = vld [vmem:[%s5 + $0x14c] sm:$0xf]
    %v171 = vld [vmem:[%s5 + $0x150] sm:$0xf]
    %v172 = vld [vmem:[%s5 + $0x154] sm:$0xf]
    %v173 = vld [vmem:[%s5 + $0x158] sm:$0xf]
    %v174 = vld [vmem:[%s5 + $0x15c] sm:$0xf]
    %v175 = vld [vmem:[%s5 + $0x160] sm:$0xf]
    %v176 = vld [vmem:[%s5 + $0x164] sm:$0xf]
    %v177 = vld [vmem:[%s5 + $0x168] sm:$0xf]
    %v178 = vld [vmem:[%s5 + $0x16c] sm:$0xf]
    %v179 = vld [vmem:[%s5 + $0x170] sm:$0xf]
    %v180 = vld [vmem:[%s5 + $0x174] sm:$0xf]
    %v181 = vld [vmem:[%s5 + $0x178] sm:$0xf]
    %v182 = vld [vmem:[%s5 + $0x17c] sm:$0xf]
    %v183 = vld [vmem:[%s5 + $0x180] sm:$0xf]
    %v184 = vld [vmem:[%s5 + $0x184] sm:$0xf]
    %v185 = vld [vmem:[%s5 + $0x188] sm:$0xf]
    %v186 = vld [vmem:[%s5 + $0x18c] sm:$0xf]
    %v187 = vld [vmem:[%s5 + $0x190] sm:$0xf]
    %v188 = vld [vmem:[%s5 + $0x194] sm:$0xf]
    %v189 = vld [vmem:[%s5 + $0x198] sm:$0xf]
    %v190 = vld [vmem:[%s5 + $0x19c] sm:$0xf]
    %v191 = vld [vmem:[%s5 + $0x1a0] sm:$0xf]
    %v192 = vld [vmem:[%s5 + $0x1a4] sm:$0xf]
    %v193 = vld [vmem:[%s5 + $0x1a8] sm:$0xf]
    %v194 = vld [vmem:[%s5 + $0x1ac] sm:$0xf]
    %v195 = vld [vmem:[%s5 + $0x1b0] sm:$0xf]
    %v196 = vld [vmem:[%s5 + $0x1b4] sm:$0xf]
    %v197 = vld [vmem:[%s5 + $0x1b8] sm:$0xf]
    %v198 = vld [vmem:[%s5 + $0x1bc] sm:$0xf]
    %v199 = vld [vmem:[%s5 + $0x1c0] sm:$0xf]
    %v200 = vld [vmem:[%s5 + $0x1c4] sm:$0xf]
    %v201 = vld [vmem:[%s5 + $0x1c8] sm:$0xf]
    %v202 = vld [vmem:[%s5 + $0x1cc] sm:$0xf]
    %v203 = vld [vmem:[%s5 + $0x1d0] sm:$0xf]
    %v204 = vld [vmem:[%s5 + $0x1d4] sm:$0xf]
    %v205 = vld [vmem:[%s5 + $0x1d8] sm:$0xf]
    %v206 = vld [vmem:[%s5 + $0x1dc] sm:$0xf]
    %v207 = vld [vmem:[%s5 + $0x1e0] sm:$0xf]
    %v208 = vld [vmem:[%s5 + $0x1e4] sm:$0xf]
    %v209 = vld [vmem:[%s5 + $0x1e8] sm:$0xf]
    %v210 = vld [vmem:[%s5 + $0x1ec] sm:$0xf]
    %v211 = vld [vmem:[%s5 + $0x1f0] sm:$0xf]
    %v212 = vld [vmem:[%s5 + $0x1f4] sm:$0xf]
    %v213 = vld [vmem:[%s5 + $0x1f8] sm:$0xf]
    %v214 = vld [vmem:[%s5 + $0x1fc] sm:$0xf]
    %v215 = vld [vmem:[%s6] sm:$0x1]
    %v217 = vlaneseq
    %v218 = vshrl.u32 %v217, 7
    %v219 = vsub.s32 0, %v218
    %v220 = vrot.slane %v215, %v219
    %v230 = vunpack.c.l.b16 %v79
    %v231 = vunpack.c.h.b16 %v79
    %v232 = vunpack.c.l.b16 %v80
    %v233 = vunpack.c.h.b16 %v80
    %v234 = vunpack.c.l.b16 %v81
    %v235 = vunpack.c.h.b16 %v81
    %v236 = vunpack.c.l.b16 %v82
    %v237 = vunpack.c.h.b16 %v82
    %v238 = vunpack.c.l.b16 %v83
    %v239 = vunpack.c.h.b16 %v83
    %v240 = vunpack.c.l.b16 %v84
    %v241 = vunpack.c.h.b16 %v84
    %v242 = vunpack.c.l.b16 %v85
    %v243 = vunpack.c.h.b16 %v85
    %v244 = vunpack.c.l.b16 %v86
    %v245 = vunpack.c.h.b16 %v86
    %v246 = vpack.c.b16 %v238, %v230
    %v247 = vpack.c.b16 %v239, %v231
    %v248 = vpack.c.b16 %v240, %v232
    %v249 = vpack.c.b16 %v241, %v233
    %v250 = vpack.c.b16 %v242, %v234
    %v251 = vpack.c.b16 %v243, %v235
    %v252 = vpack.c.b16 %v244, %v236
    %v253 = vpack.c.b16 %v245, %v237
    %v390 = vunpack.c.l.b16 %v87
    %v391 = vunpack.c.l.b16 %v88
    %v392 = vunpack.c.l.b16 %v89
    %v393 = vunpack.c.l.b16 %v90
    %v394 = vunpack.c.l.b16 %v91
    %v395 = vunpack.c.l.b16 %v92
    %v396 = vunpack.c.l.b16 %v93
    %v397 = vunpack.c.l.b16 %v94
    %v398 = vunpack.c.l.b16 %v95
    %v399 = vunpack.c.l.b16 %v96
    %v400 = vunpack.c.l.b16 %v97
    %v401 = vunpack.c.l.b16 %v98
    %v402 = vunpack.c.l.b16 %v99
    %v403 = vunpack.c.l.b16 %v100
    %v404 = vunpack.c.l.b16 %v101
    %v405 = vunpack.c.l.b16 %v102
    %v406 = vunpack.c.l.b16 %v103
    %v407 = vunpack.c.l.b16 %v104
    %v408 = vunpack.c.l.b16 %v105
    %v409 = vunpack.c.l.b16 %v106
    %v410 = vunpack.c.l.b16 %v107
    %v411 = vunpack.c.l.b16 %v108
    %v412 = vunpack.c.l.b16 %v109
    %v413 = vunpack.c.l.b16 %v110
    %v414 = vunpack.c.l.b16 %v111
    %v415 = vunpack.c.l.b16 %v112
    %v416 = vunpack.c.l.b16 %v113
    %v417 = vunpack.c.l.b16 %v114
    %v418 = vunpack.c.l.b16 %v115
    %v419 = vunpack.c.l.b16 %v116
    %v420 = vunpack.c.l.b16 %v117
    %v421 = vunpack.c.l.b16 %v118
    %v422 = vunpack.c.l.b16 %v119
    %v423 = vunpack.c.l.b16 %v120
    %v424 = vunpack.c.l.b16 %v121
    %v425 = vunpack.c.l.b16 %v122
    %v426 = vunpack.c.l.b16 %v123
    %v427 = vunpack.c.l.b16 %v124
    %v428 = vunpack.c.l.b16 %v125
    %v429 = vunpack.c.l.b16 %v126
    %v430 = vunpack.c.l.b16 %v127
    %v431 = vunpack.c.l.b16 %v128
    %v432 = vunpack.c.l.b16 %v129
    %v433 = vunpack.c.l.b16 %v130
    %v434 = vunpack.c.l.b16 %v131
    %v435 = vunpack.c.l.b16 %v132
    %v436 = vunpack.c.l.b16 %v133
    %v437 = vunpack.c.l.b16 %v134
    %v438 = vunpack.c.l.b16 %v135
    %v439 = vunpack.c.l.b16 %v136
    %v440 = vunpack.c.l.b16 %v137
    %v441 = vunpack.c.l.b16 %v138
    %v442 = vunpack.c.l.b16 %v139
    %v443 = vunpack.c.l.b16 %v140
    %v444 = vunpack.c.l.b16 %v141
    %v445 = vunpack.c.l.b16 %v142
    %v446 = vunpack.c.l.b16 %v143
    %v447 = vunpack.c.l.b16 %v144
    %v448 = vunpack.c.l.b16 %v145
    %v449 = vunpack.c.l.b16 %v146
    %v450 = vunpack.c.l.b16 %v147
    %v451 = vunpack.c.l.b16 %v148
    %v452 = vunpack.c.l.b16 %v149
    %v453 = vunpack.c.l.b16 %v150
    %v454 = vunpack.c.l.b16 %v151
    %v455 = vunpack.c.l.b16 %v152
    %v456 = vunpack.c.l.b16 %v153
    %v457 = vunpack.c.l.b16 %v154
    %v458 = vunpack.c.l.b16 %v155
    %v459 = vunpack.c.l.b16 %v156
    %v460 = vunpack.c.l.b16 %v157
    %v461 = vunpack.c.l.b16 %v158
    %v462 = vunpack.c.l.b16 %v159
    %v463 = vunpack.c.l.b16 %v160
    %v464 = vunpack.c.l.b16 %v161
    %v465 = vunpack.c.l.b16 %v162
    %v466 = vunpack.c.l.b16 %v163
    %v467 = vunpack.c.l.b16 %v164
    %v468 = vunpack.c.l.b16 %v165
    %v469 = vunpack.c.l.b16 %v166
    %v470 = vunpack.c.l.b16 %v167
    %v471 = vunpack.c.l.b16 %v168
    %v472 = vunpack.c.l.b16 %v169
    %v473 = vunpack.c.l.b16 %v170
    %v474 = vunpack.c.l.b16 %v171
    %v475 = vunpack.c.l.b16 %v172
    %v476 = vunpack.c.l.b16 %v173
    %v477 = vunpack.c.l.b16 %v174
    %v478 = vunpack.c.l.b16 %v175
    %v479 = vunpack.c.l.b16 %v176
    %v480 = vunpack.c.l.b16 %v177
    %v481 = vunpack.c.l.b16 %v178
    %v482 = vunpack.c.l.b16 %v179
    %v483 = vunpack.c.l.b16 %v180
    %v484 = vunpack.c.l.b16 %v181
    %v485 = vunpack.c.l.b16 %v182
    %v486 = vunpack.c.l.b16 %v183
    %v487 = vunpack.c.l.b16 %v184
    %v488 = vunpack.c.l.b16 %v185
    %v489 = vunpack.c.l.b16 %v186
    %v490 = vunpack.c.l.b16 %v187
    %v491 = vunpack.c.l.b16 %v188
    %v492 = vunpack.c.l.b16 %v189
    %v493 = vunpack.c.l.b16 %v190
    %v494 = vunpack.c.l.b16 %v191
    %v495 = vunpack.c.l.b16 %v192
    %v496 = vunpack.c.l.b16 %v193
    %v497 = vunpack.c.l.b16 %v194
    %v498 = vunpack.c.l.b16 %v195
    %v499 = vunpack.c.l.b16 %v196
    %v500 = vunpack.c.l.b16 %v197
    %v501 = vunpack.c.l.b16 %v198
    %v502 = vunpack.c.l.b16 %v199
    %v503 = vunpack.c.l.b16 %v200
    %v504 = vunpack.c.l.b16 %v201
    %v505 = vunpack.c.l.b16 %v202
    %v506 = vunpack.c.l.b16 %v203
    %v507 = vunpack.c.l.b16 %v204
    %v508 = vunpack.c.l.b16 %v205
    %v509 = vunpack.c.l.b16 %v206
    %v510 = vunpack.c.l.b16 %v207
    %v511 = vunpack.c.l.b16 %v208
    %v512 = vunpack.c.l.b16 %v209
    %v513 = vunpack.c.l.b16 %v210
    %v514 = vunpack.c.l.b16 %v211
    %v515 = vunpack.c.l.b16 %v212
    %v516 = vunpack.c.l.b16 %v213
    %v517 = vunpack.c.l.b16 %v214
    %v518 = vpack.c.b16 %v391, %v390
    %v519 = vpack.c.b16 %v393, %v392
    %v520 = vpack.c.b16 %v395, %v394
    %v521 = vpack.c.b16 %v397, %v396
    %v522 = vpack.c.b16 %v399, %v398
    %v523 = vpack.c.b16 %v401, %v400
    %v524 = vpack.c.b16 %v403, %v402
    %v525 = vpack.c.b16 %v405, %v404
    %v526 = vpack.c.b16 %v407, %v406
    %v527 = vpack.c.b16 %v409, %v408
    %v528 = vpack.c.b16 %v411, %v410
    %v529 = vpack.c.b16 %v413, %v412
    %v530 = vpack.c.b16 %v415, %v414
    %v531 = vpack.c.b16 %v417, %v416
    %v532 = vpack.c.b16 %v419, %v418
    %v533 = vpack.c.b16 %v421, %v420
    %v534 = vpack.c.b16 %v423, %v422
    %v535 = vpack.c.b16 %v425, %v424
    %v536 = vpack.c.b16 %v427, %v426
    %v537 = vpack.c.b16 %v429, %v428
    %v538 = vpack.c.b16 %v431, %v430
    %v539 = vpack.c.b16 %v433, %v432
    %v540 = vpack.c.b16 %v435, %v434
    %v541 = vpack.c.b16 %v437, %v436
    %v542 = vpack.c.b16 %v439, %v438
    %v543 = vpack.c.b16 %v441, %v440
    %v544 = vpack.c.b16 %v443, %v442
    %v545 = vpack.c.b16 %v445, %v444
    %v546 = vpack.c.b16 %v447, %v446
    %v547 = vpack.c.b16 %v449, %v448
    %v548 = vpack.c.b16 %v451, %v450
    %v549 = vpack.c.b16 %v453, %v452
    %v550 = vpack.c.b16 %v455, %v454
    %v551 = vpack.c.b16 %v457, %v456
    %v552 = vpack.c.b16 %v459, %v458
    %v553 = vpack.c.b16 %v461, %v460
    %v554 = vpack.c.b16 %v463, %v462
    %v555 = vpack.c.b16 %v465, %v464
    %v556 = vpack.c.b16 %v467, %v466
    %v557 = vpack.c.b16 %v469, %v468
    %v558 = vpack.c.b16 %v471, %v470
    %v559 = vpack.c.b16 %v473, %v472
    %v560 = vpack.c.b16 %v475, %v474
    %v561 = vpack.c.b16 %v477, %v476
    %v562 = vpack.c.b16 %v479, %v478
    %v563 = vpack.c.b16 %v481, %v480
    %v564 = vpack.c.b16 %v483, %v482
    %v565 = vpack.c.b16 %v485, %v484
    %v566 = vpack.c.b16 %v487, %v486
    %v567 = vpack.c.b16 %v489, %v488
    %v568 = vpack.c.b16 %v491, %v490
    %v569 = vpack.c.b16 %v493, %v492
    %v570 = vpack.c.b16 %v495, %v494
    %v571 = vpack.c.b16 %v497, %v496
    %v572 = vpack.c.b16 %v499, %v498
    %v573 = vpack.c.b16 %v501, %v500
    %v574 = vpack.c.b16 %v503, %v502
    %v575 = vpack.c.b16 %v505, %v504
    %v576 = vpack.c.b16 %v507, %v506
    %v577 = vpack.c.b16 %v509, %v508
    %v578 = vpack.c.b16 %v511, %v510
    %v579 = vpack.c.b16 %v513, %v512
    %v580 = vpack.c.b16 %v515, %v514
    %v581 = vpack.c.b16 %v517, %v516
    %646 = vmatprep.subr.bf16.mxu0 0
    %647 = vmatpush1.bf16.msra.mxu0 %v518
    %648 = vmatprep.subr.bf16.mxu0 0
    %649 = vmatpush1.bf16.msra.mxu0 %v519
    %650 = vmatprep.subr.bf16.mxu0 0
    %651 = vmatpush1.bf16.msra.mxu0 %v520
    %652 = vmatprep.subr.bf16.mxu0 0
    %653 = vmatpush1.bf16.msra.mxu0 %v521
    %654 = vmatprep.subr.bf16.mxu0 0
    %655 = vmatpush1.bf16.msra.mxu0 %v522
    %656 = vmatprep.subr.bf16.mxu0 0
    %657 = vmatpush1.bf16.msra.mxu0 %v523
    %658 = vmatprep.subr.bf16.mxu0 0
    %659 = vmatpush1.bf16.msra.mxu0 %v524
    %660 = vmatprep.subr.bf16.mxu0 0
    %661 = vmatpush1.bf16.msra.mxu0 %v525
    %662 = vmatprep.subr.bf16.mxu0 0
    %663 = vmatpush1.bf16.msra.mxu0 %v526
    %664 = vmatprep.subr.bf16.mxu0 0
    %665 = vmatpush1.bf16.msra.mxu0 %v527
    %666 = vmatprep.subr.bf16.mxu0 0
    %667 = vmatpush1.bf16.msra.mxu0 %v528
    %668 = vmatprep.subr.bf16.mxu0 0
    %669 = vmatpush1.bf16.msra.mxu0 %v529
    %670 = vmatprep.subr.bf16.mxu0 0
    %671 = vmatpush1.bf16.msra.mxu0 %v530
    %672 = vmatprep.subr.bf16.mxu0 0
    %673 = vmatpush1.bf16.msra.mxu0 %v531
    %674 = vmatprep.subr.bf16.mxu0 0
    %675 = vmatpush1.bf16.msra.mxu0 %v532
    %676 = vmatprep.subr.bf16.mxu0 0
    %677 = vmatpush1.bf16.msra.mxu0 %v533
    %678 = vmatprep.mubr.bf16.mxu0 %v247
    %679 = vmatmul.mubr.bf16.gmra.mrb[0].mxu0 %v246
    %v680 = vpop.f32.mrb[0].mxu0
    %v681 = vadd.f32 %v220, %v680
    %v682 = vpop.f32.mrb[0].mxu0
    %v683 = vpop.f32.mrb[0].mxu0
    %v684 = vadd.f32 %v220, %v683
    %v685 = vpop.f32.mrb[0].mxu0
    %686 = vdwg.mxu0
    %687 = vmatprep.subr.bf16.mxu0 0
    %688 = vmatpush1.bf16.msra.mxu0 %v534
    %689 = vmatprep.subr.bf16.mxu0 0
    %690 = vmatpush1.bf16.msra.mxu0 %v535
    %691 = vmatprep.subr.bf16.mxu0 0
    %692 = vmatpush1.bf16.msra.mxu0 %v536
    %693 = vmatprep.subr.bf16.mxu0 0
    %694 = vmatpush1.bf16.msra.mxu0 %v537
    %695 = vmatprep.subr.bf16.mxu0 0
    %696 = vmatpush1.bf16.msra.mxu0 %v538
    %697 = vmatprep.subr.bf16.mxu0 0
    %698 = vmatpush1.bf16.msra.mxu0 %v539
    %699 = vmatprep.subr.bf16.mxu0 0
    %700 = vmatpush1.bf16.msra.mxu0 %v540
    %701 = vmatprep.subr.bf16.mxu0 0
    %702 = vmatpush1.bf16.msra.mxu0 %v541
    %703 = vmatprep.subr.bf16.mxu0 0
    %704 = vmatpush1.bf16.msra.mxu0 %v542
    %705 = vmatprep.subr.bf16.mxu0 0
    %706 = vmatpush1.bf16.msra.mxu0 %v543
    %707 = vmatprep.subr.bf16.mxu0 0
    %708 = vmatpush1.bf16.msra.mxu0 %v544
    %709 = vmatprep.subr.bf16.mxu0 0
    %710 = vmatpush1.bf16.msra.mxu0 %v545
    %711 = vmatprep.subr.bf16.mxu0 0
    %712 = vmatpush1.bf16.msra.mxu0 %v546
    %713 = vmatprep.subr.bf16.mxu0 0
    %714 = vmatpush1.bf16.msra.mxu0 %v547
    %715 = vmatprep.subr.bf16.mxu0 0
    %716 = vmatpush1.bf16.msra.mxu0 %v548
    %717 = vmatprep.subr.bf16.mxu0 0
    %718 = vmatpush1.bf16.msra.mxu0 %v549
    %719 = vmatprep.mubr.bf16.mxu0 %v249
    %720 = vmatmul.mubr.bf16.gmra.mrb[0].mxu0 %v248
    %v721 = vpop.f32.mrb[0].mxu0
    %v722 = vadd.f32 %v681, %v721
    %v723 = vpop.f32.mrb[0].mxu0
    %v724 = vpop.f32.mrb[0].mxu0
    %v725 = vadd.f32 %v684, %v724
    %v726 = vpop.f32.mrb[0].mxu0
    %727 = vdwg.mxu0
    %728 = vmatprep.subr.bf16.mxu0 0
    %729 = vmatpush1.bf16.msra.mxu0 %v550
    %730 = vmatprep.subr.bf16.mxu0 0
    %731 = vmatpush1.bf16.msra.mxu0 %v551
    %732 = vmatprep.subr.bf16.mxu0 0
    %733 = vmatpush1.bf16.msra.mxu0 %v552
    %734 = vmatprep.subr.bf16.mxu0 0
    %735 = vmatpush1.bf16.msra.mxu0 %v553
    %736 = vmatprep.subr.bf16.mxu0 0
    %737 = vmatpush1.bf16.msra.mxu0 %v554
    %738 = vmatprep.subr.bf16.mxu0 0
    %739 = vmatpush1.bf16.msra.mxu0 %v555
    %740 = vmatprep.subr.bf16.mxu0 0
    %741 = vmatpush1.bf16.msra.mxu0 %v556
    %742 = vmatprep.subr.bf16.mxu0 0
    %743 = vmatpush1.bf16.msra.mxu0 %v557
    %744 = vmatprep.subr.bf16.mxu0 0
    %745 = vmatpush1.bf16.msra.mxu0 %v558
    %746 = vmatprep.subr.bf16.mxu0 0
    %747 = vmatpush1.bf16.msra.mxu0 %v559
    %748 = vmatprep.subr.bf16.mxu0 0
    %749 = vmatpush1.bf16.msra.mxu0 %v560
    %750 = vmatprep.subr.bf16.mxu0 0
    %751 = vmatpush1.bf16.msra.mxu0 %v561
    %752 = vmatprep.subr.bf16.mxu0 0
    %753 = vmatpush1.bf16.msra.mxu0 %v562
    %754 = vmatprep.subr.bf16.mxu0 0
    %755 = vmatpush1.bf16.msra.mxu0 %v563
    %756 = vmatprep.subr.bf16.mxu0 0
    %757 = vmatpush1.bf16.msra.mxu0 %v564
    %758 = vmatprep.subr.bf16.mxu0 0
    %759 = vmatpush1.bf16.msra.mxu0 %v565
    %760 = vmatprep.mubr.bf16.mxu0 %v251
    %761 = vmatmul.mubr.bf16.gmra.mrb[0].mxu0 %v250
    %v762 = vpop.f32.mrb[0].mxu0
    %v763 = vadd.f32 %v722, %v762
    %v764 = vpop.f32.mrb[0].mxu0
    %v765 = vpop.f32.mrb[0].mxu0
    %v766 = vadd.f32 %v725, %v765
    %v767 = vpop.f32.mrb[0].mxu0
    %768 = vdwg.mxu0
    %769 = vmatprep.subr.bf16.mxu0 0
    %770 = vmatpush1.bf16.msra.mxu0 %v566
    %771 = vmatprep.subr.bf16.mxu0 0
    %772 = vmatpush1.bf16.msra.mxu0 %v567
    %773 = vmatprep.subr.bf16.mxu0 0
    %774 = vmatpush1.bf16.msra.mxu0 %v568
    %775 = vmatprep.subr.bf16.mxu0 0
    %776 = vmatpush1.bf16.msra.mxu0 %v569
    %777 = vmatprep.subr.bf16.mxu0 0
    %778 = vmatpush1.bf16.msra.mxu0 %v570
    %779 = vmatprep.subr.bf16.mxu0 0
    %780 = vmatpush1.bf16.msra.mxu0 %v571
    %781 = vmatprep.subr.bf16.mxu0 0
    %782 = vmatpush1.bf16.msra.mxu0 %v572
    %783 = vmatprep.subr.bf16.mxu0 0
    %784 = vmatpush1.bf16.msra.mxu0 %v573
    %785 = vmatprep.subr.bf16.mxu0 0
    %786 = vmatpush1.bf16.msra.mxu0 %v574
    %787 = vmatprep.subr.bf16.mxu0 0
    %788 = vmatpush1.bf16.msra.mxu0 %v575
    %789 = vmatprep.subr.bf16.mxu0 0
    %790 = vmatpush1.bf16.msra.mxu0 %v576
    %791 = vmatprep.subr.bf16.mxu0 0
    %792 = vmatpush1.bf16.msra.mxu0 %v577
    %793 = vmatprep.subr.bf16.mxu0 0
    %794 = vmatpush1.bf16.msra.mxu0 %v578
    %795 = vmatprep.subr.bf16.mxu0 0
    %796 = vmatpush1.bf16.msra.mxu0 %v579
    %797 = vmatprep.subr.bf16.mxu0 0
    %798 = vmatpush1.bf16.msra.mxu0 %v580
    %799 = vmatprep.subr.bf16.mxu0 0
    %800 = vmatpush1.bf16.msra.mxu0 %v581
    %801 = vmatprep.mubr.bf16.mxu0 %v253
    %802 = vmatmul.mubr.bf16.gmra.mrb[0].mxu0 %v252
    %v803 = vpop.f32.mrb[0].mxu0
    %v804 = vadd.f32 %v763, %v803
    %v805 = vpop.f32.mrb[0].mxu0
    %v806 = vpop.f32.mrb[0].mxu0
    %v807 = vadd.f32 %v766, %v806
    %v808 = vpop.f32.mrb[0].mxu0
    %809 = vdwg.mxu0
    %v810 = vld [vmem:[%s3] sm:$0xf]
    %v811 = vld [vmem:[%s3 + $0x4] sm:$0xf]
    %v812 = vld [vmem:[%s4] sm:$0xff]
    %v813 = vld [vmem:[%s4 + $0x8] sm:$0xff]
    %v814 = vpack.c.bf16 %v807, %v804
    %v817 = vunpack.c.l.b16 %v810
    %v818 = vunpack.c.l.b16 %v811
    %v819 = vpack.c.b16 %v818, %v817
    %vm820 = vcmask 130048
    %v822 = vsel %vm820, %v819, 0
    %824 = vmatprep.subr.bf16.mxu0 0
    %825 = vmatpush1.bf16.msra.mxu0 %v814
    %826 = vmatprep.subr.bf16.mxu0 0
    %827 = vmatpush1.bf16.msra.mxu0 0
    %828 = vmatprep.subr.bf16.mxu0 0
    %829 = vmatpush1.bf16.msra.mxu0 0
    %830 = vmatprep.subr.bf16.mxu0 0
    %831 = vmatpush1.bf16.msra.mxu0 0
    %832 = vmatprep.subr.bf16.mxu0 0
    %833 = vmatpush1.bf16.msra.mxu0 0
    %834 = vmatprep.subr.bf16.mxu0 0
    %835 = vmatpush1.bf16.msra.mxu0 0
    %836 = vmatprep.subr.bf16.mxu0 0
    %837 = vmatpush1.bf16.msra.mxu0 0
    %838 = vmatprep.subr.bf16.mxu0 0
    %839 = vmatpush1.bf16.msra.mxu0 0
    %840 = vmatprep.subr.bf16.mxu0 0
    %841 = vmatpush1.bf16.msra.mxu0 0
    %842 = vmatprep.subr.bf16.mxu0 0
    %843 = vmatpush1.bf16.msra.mxu0 0
    %844 = vmatprep.subr.bf16.mxu0 0
    %845 = vmatpush1.bf16.msra.mxu0 0
    %846 = vmatprep.subr.bf16.mxu0 0
    %847 = vmatpush1.bf16.msra.mxu0 0
    %848 = vmatprep.subr.bf16.mxu0 0
    %849 = vmatpush1.bf16.msra.mxu0 0
    %850 = vmatprep.subr.bf16.mxu0 0
    %851 = vmatpush1.bf16.msra.mxu0 0
    %852 = vmatprep.subr.bf16.mxu0 0
    %853 = vmatpush1.bf16.msra.mxu0 0
    %854 = vmatprep.subr.bf16.mxu0 0
    %855 = vmatpush1.bf16.msra.mxu0 0
    %856 = vmatprep.mubr.bf16.mxu0 0
    %857 = vmatmul.mubr.bf16.gmra.mrb[0].mxu0 %v822
    %v858 = vpop.f32.mrb[0].mxu0
    %v859 = vadd.f32 0.0, %v858
    %v860 = vpop.f32.mrb[0].mxu0
    %v861 = vpop.f32.mrb[0].mxu0
    %v862 = vadd.f32 0.0, %v861
    %v863 = vpop.f32.mrb[0].mxu0
    %864 = vdwg.mxu0
    %866 = vset.pattern.permute.xlu0 0
    %867 = vperm.xlu0 %866, %v812
    %v868 = vpop.permute.xlu0 %867
    %871 = vset.pattern.permute.xlu0 0
    %872 = vperm.xlu0 %871, %v813
    %v873 = vpop.permute.xlu0 %872
    %v875 = vmul.f32 %v859, %v868
    %v876 = vmul.f32 %v862, %v873
    %v877 = vld [vmem:[%s7] sm:$0xf]
    %v878 = vld [vmem:[%s7 + $0x4] sm:$0xf]
    %v879 = vld [vmem:[%s7 + $0x8] sm:$0xf]
    %v880 = vld [vmem:[%s7 + $0xc] sm:$0xf]
    %v881 = vpack.c.bf16 %v876, %v875
    %v882 = vld [vmem:[%s8] sm:$0xf]
    %v883 = vld [vmem:[%s8 + $0x4] sm:$0xf]
    %v884 = vld [vmem:[%s8 + $0x8] sm:$0xf]
    %v885 = vld [vmem:[%s8 + $0xc] sm:$0xf]
    %v890 = vunpack.c.l.b16 %v882
    %v891 = vunpack.c.l.b16 %v883
    %v892 = vunpack.c.l.b16 %v884
    %v893 = vunpack.c.l.b16 %v885
    %v894 = vpack.c.b16 %v891, %v890
    %v895 = vpack.c.b16 %v893, %v892
    %vm898 = vcmask 261120
    %v900 = vsel %vm898, %v881, 0
    %902 = vmatprep.subr.bf16.mxu0 0
    %903 = vmatpush1.bf16.msra.mxu0 %v894
    %904 = vmatprep.subr.bf16.mxu0 0
    %905 = vmatpush1.bf16.msra.mxu0 %v895
    %906 = vmatprep.subr.bf16.mxu0 0
    %907 = vmatpush1.bf16.msra.mxu0 0
    %908 = vmatprep.subr.bf16.mxu0 0
    %909 = vmatpush1.bf16.msra.mxu0 0
    %910 = vmatprep.subr.bf16.mxu0 0
    %911 = vmatpush1.bf16.msra.mxu0 0
    %912 = vmatprep.subr.bf16.mxu0 0
    %913 = vmatpush1.bf16.msra.mxu0 0
    %914 = vmatprep.subr.bf16.mxu0 0
    %915 = vmatpush1.bf16.msra.mxu0 0
    %916 = vmatprep.subr.bf16.mxu0 0
    %917 = vmatpush1.bf16.msra.mxu0 0
    %918 = vmatprep.subr.bf16.mxu0 0
    %919 = vmatpush1.bf16.msra.mxu0 0
    %920 = vmatprep.subr.bf16.mxu0 0
    %921 = vmatpush1.bf16.msra.mxu0 0
    %922 = vmatprep.subr.bf16.mxu0 0
    %923 = vmatpush1.bf16.msra.mxu0 0
    %924 = vmatprep.subr.bf16.mxu0 0
    %925 = vmatpush1.bf16.msra.mxu0 0
    %926 = vmatprep.subr.bf16.mxu0 0
    %927 = vmatpush1.bf16.msra.mxu0 0
    %928 = vmatprep.subr.bf16.mxu0 0
    %929 = vmatpush1.bf16.msra.mxu0 0
    %930 = vmatprep.subr.bf16.mxu0 0
    %931 = vmatpush1.bf16.msra.mxu0 0
    %932 = vmatprep.subr.bf16.mxu0 0
    %933 = vmatpush1.bf16.msra.mxu0 0
    %934 = vmatprep.mubr.bf16.mxu0 0
    %935 = vmatmul.mubr.bf16.gmra.mrb[0].mxu0 %v900
    %v936 = vpop.f32.mrb[0].mxu0
    %v937 = vadd.f32 0.0, %v936
    %v938 = vpop.f32.mrb[0].mxu0
    %v939 = vpop.f32.mrb[0].mxu0
    %v940 = vadd.f32 0.0, %v939
    %v941 = vpop.f32.mrb[0].mxu0
    %942 = vdwg.mxu0
    %v947 = vunpack.c.l.b16 %v877
    %v948 = vunpack.c.l.b16 %v878
    %v949 = vunpack.c.l.b16 %v879
    %v950 = vunpack.c.l.b16 %v880
    %v951 = vpack.c.b16 %v948, %v947
    %v952 = vpack.c.b16 %v950, %v949
    %v956 = vsel %vm898, %v814, 0
    %958 = vmatprep.subr.bf16.mxu0 0
    %959 = vmatpush1.bf16.msra.mxu0 %v951
    %960 = vmatprep.subr.bf16.mxu0 0
    %961 = vmatpush1.bf16.msra.mxu0 %v952
    %962 = vmatprep.subr.bf16.mxu0 0
    %963 = vmatpush1.bf16.msra.mxu0 0
    %964 = vmatprep.subr.bf16.mxu0 0
    %965 = vmatpush1.bf16.msra.mxu0 0
    %966 = vmatprep.subr.bf16.mxu0 0
    %967 = vmatpush1.bf16.msra.mxu0 0
    %968 = vmatprep.subr.bf16.mxu0 0
    %969 = vmatpush1.bf16.msra.mxu0 0
    %970 = vmatprep.subr.bf16.mxu0 0
    %971 = vmatpush1.bf16.msra.mxu0 0
    %972 = vmatprep.subr.bf16.mxu0 0
    %973 = vmatpush1.bf16.msra.mxu0 0
    %974 = vmatprep.subr.bf16.mxu0 0
    %975 = vmatpush1.bf16.msra.mxu0 0
    %976 = vmatprep.subr.bf16.mxu0 0
    %977 = vmatpush1.bf16.msra.mxu0 0
    %978 = vmatprep.subr.bf16.mxu0 0
    %979 = vmatpush1.bf16.msra.mxu0 0
    %980 = vmatprep.subr.bf16.mxu0 0
    %981 = vmatpush1.bf16.msra.mxu0 0
    %982 = vmatprep.subr.bf16.mxu0 0
    %983 = vmatpush1.bf16.msra.mxu0 0
    %984 = vmatprep.subr.bf16.mxu0 0
    %985 = vmatpush1.bf16.msra.mxu0 0
    %986 = vmatprep.subr.bf16.mxu0 0
    %987 = vmatpush1.bf16.msra.mxu0 0
    %988 = vmatprep.subr.bf16.mxu0 0
    %989 = vmatpush1.bf16.msra.mxu0 0
    %990 = vmatprep.mubr.bf16.mxu0 0
    %991 = vmatmul.mubr.bf16.gmra.mrb[0].mxu0 %v956
    %v992 = vpop.f32.mrb[0].mxu0
    %v993 = vadd.f32 %v937, %v992
    %v994 = vpop.f32.mrb[0].mxu0
    %v995 = vpop.f32.mrb[0].mxu0
    %v996 = vadd.f32 %v940, %v995
    %v997 = vpop.f32.mrb[0].mxu0
    %998 = vdwg.mxu0
    %v999 = vld [vmem:[%s9] sm:$0x1]
    %v1001 = vlaneseq
    %v1002 = vshrl.u32 %v1001, 7
    %v1003 = vsub.s32 0, %v1002
    %v1004 = vrot.slane %v999, %v1003
    %v1006 = vadd.f32 %v993, %v1004
    %v1007 = vadd.f32 %v996, %v1004
    %v1008 = vmul.f32 %v1006, %v1006
    %v1009 = vmul.f32 %v1007, %v1007
    %v1010 = vsel %vm898, %v1008, 0.0
    %1011 = vadd.xlane.f32.xlu0 %v1010
    %v1012 = vpop.xlane.xlu0 %1011
    %v1013 = vsel %vm898, %v1009, 0.0
    %1014 = vadd.xlane.f32.xlu0 %v1013
    %v1015 = vpop.xlane.xlu0 %1014
    %v1016 = vmax.f32 %v1012, 1e-24
    %v1017 = vmax.f32 %v1015, 1e-24
    %v1018 = vrsqrt.pop %v1016
    %v1019 = vrsqrt.pop %v1017
    %v1020 = vmul.f32 %v1006, %v1018
    %v1021 = vmul.f32 %v1007, %v1019
    %v1022 = vmax.f32 %v1020, 0.0
    %v1023 = vmax.f32 %v1021, 0.0
    %v1024 = vld [vmem:[%s10] sm:$0x1]
    %v1026 = vlaneseq
    %v1027 = vshrl.u32 %v1026, 7
    %v1028 = vsub.s32 0, %v1027
    %v1029 = vrot.slane %v1024, %v1028
    %v1031 = vmul.f32 %v1022, %v1029
    %v1032 = vmul.f32 %v1023, %v1029
    %v1033 = vld [vmem:[%s11] sm:$0x1]
    %v1035 = vlaneseq
    %v1036 = vshrl.u32 %v1035, 7
    %v1037 = vsub.s32 0, %v1036
    %v1038 = vrot.slane %v1033, %v1037
    %v1040 = vadd.f32 %v1031, %v1038
    %v1041 = vadd.f32 %v1032, %v1038
    %v1042 = vadd.f32 %v1040, %v804
    %v1043 = vadd.f32 %v1041, %v807
    %v1044 = vpack.c.bf16 %v1043, %v1042
    %1045 = vmatprep.subr.bf16.mxu0 0
    %1046 = vmatpush1.bf16.msra.mxu0 %v1044
    %1047 = vmatprep.subr.bf16.mxu0 0
    %1048 = vmatpush1.bf16.msra.mxu0 0
    %1049 = vmatprep.subr.bf16.mxu0 0
    %1050 = vmatpush1.bf16.msra.mxu0 0
    %1051 = vmatprep.subr.bf16.mxu0 0
    %1052 = vmatpush1.bf16.msra.mxu0 0
    %1053 = vmatprep.subr.bf16.mxu0 0
    %1054 = vmatpush1.bf16.msra.mxu0 0
    %1055 = vmatprep.subr.bf16.mxu0 0
    %1056 = vmatpush1.bf16.msra.mxu0 0
    %1057 = vmatprep.subr.bf16.mxu0 0
    %1058 = vmatpush1.bf16.msra.mxu0 0
    %1059 = vmatprep.subr.bf16.mxu0 0
    %1060 = vmatpush1.bf16.msra.mxu0 0
    %1061 = vmatprep.subr.bf16.mxu0 0
    %1062 = vmatpush1.bf16.msra.mxu0 0
    %1063 = vmatprep.subr.bf16.mxu0 0
    %1064 = vmatpush1.bf16.msra.mxu0 0
    %1065 = vmatprep.subr.bf16.mxu0 0
    %1066 = vmatpush1.bf16.msra.mxu0 0
    %1067 = vmatprep.subr.bf16.mxu0 0
    %1068 = vmatpush1.bf16.msra.mxu0 0
    %1069 = vmatprep.subr.bf16.mxu0 0
    %1070 = vmatpush1.bf16.msra.mxu0 0
    %1071 = vmatprep.subr.bf16.mxu0 0
    %1072 = vmatpush1.bf16.msra.mxu0 0
    %1073 = vmatprep.subr.bf16.mxu0 0
    %1074 = vmatpush1.bf16.msra.mxu0 0
    %1075 = vmatprep.subr.bf16.mxu0 0
    %1076 = vmatpush1.bf16.msra.mxu0 0
    %1077 = vmatprep.mubr.bf16.mxu0 0
    %1078 = vmatmul.mubr.bf16.gmra.mrb[0].mxu0 %v822
    %v1079 = vpop.f32.mrb[0].mxu0
    %v1080 = vadd.f32 0.0, %v1079
    %v1081 = vpop.f32.mrb[0].mxu0
    %v1082 = vpop.f32.mrb[0].mxu0
    %v1083 = vadd.f32 0.0, %v1082
    %v1084 = vpop.f32.mrb[0].mxu0
    %1085 = vdwg.mxu0
    %v1086 = vmul.f32 %v1080, %v868
    %v1087 = vmul.f32 %v1083, %v873
    %v1088 = vld [vmem:[%s12] sm:$0xf]
    %v1089 = vld [vmem:[%s12 + $0x4] sm:$0xf]
    %v1090 = vld [vmem:[%s12 + $0x8] sm:$0xf]
    %v1091 = vld [vmem:[%s12 + $0xc] sm:$0xf]
    %v1092 = vpack.c.bf16 %v1087, %v1086
    %v1093 = vld [vmem:[%s13] sm:$0xf]
    %v1094 = vld [vmem:[%s13 + $0x4] sm:$0xf]
    %v1095 = vld [vmem:[%s13 + $0x8] sm:$0xf]
    %v1096 = vld [vmem:[%s13 + $0xc] sm:$0xf]
    %v1101 = vunpack.c.l.b16 %v1093
    %v1102 = vunpack.c.l.b16 %v1094
    %v1103 = vunpack.c.l.b16 %v1095
    %v1104 = vunpack.c.l.b16 %v1096
    %v1105 = vpack.c.b16 %v1102, %v1101
    %v1106 = vpack.c.b16 %v1104, %v1103
    %v1110 = vsel %vm898, %v1092, 0
    %1112 = vmatprep.subr.bf16.mxu0 0
    %1113 = vmatpush1.bf16.msra.mxu0 %v1105
    %1114 = vmatprep.subr.bf16.mxu0 0
    %1115 = vmatpush1.bf16.msra.mxu0 %v1106
    %1116 = vmatprep.subr.bf16.mxu0 0
    %1117 = vmatpush1.bf16.msra.mxu0 0
    %1118 = vmatprep.subr.bf16.mxu0 0
    %1119 = vmatpush1.bf16.msra.mxu0 0
    %1120 = vmatprep.subr.bf16.mxu0 0
    %1121 = vmatpush1.bf16.msra.mxu0 0
    %1122 = vmatprep.subr.bf16.mxu0 0
    %1123 = vmatpush1.bf16.msra.mxu0 0
    %1124 = vmatprep.subr.bf16.mxu0 0
    %1125 = vmatpush1.bf16.msra.mxu0 0
    %1126 = vmatprep.subr.bf16.mxu0 0
    %1127 = vmatpush1.bf16.msra.mxu0 0
    %1128 = vmatprep.subr.bf16.mxu0 0
    %1129 = vmatpush1.bf16.msra.mxu0 0
    %1130 = vmatprep.subr.bf16.mxu0 0
    %1131 = vmatpush1.bf16.msra.mxu0 0
    %1132 = vmatprep.subr.bf16.mxu0 0
    %1133 = vmatpush1.bf16.msra.mxu0 0
    %1134 = vmatprep.subr.bf16.mxu0 0
    %1135 = vmatpush1.bf16.msra.mxu0 0
    %1136 = vmatprep.subr.bf16.mxu0 0
    %1137 = vmatpush1.bf16.msra.mxu0 0
    %1138 = vmatprep.subr.bf16.mxu0 0
    %1139 = vmatpush1.bf16.msra.mxu0 0
    %1140 = vmatprep.subr.bf16.mxu0 0
    %1141 = vmatpush1.bf16.msra.mxu0 0
    %1142 = vmatprep.subr.bf16.mxu0 0
    %1143 = vmatpush1.bf16.msra.mxu0 0
    %1144 = vmatprep.mubr.bf16.mxu0 0
    %1145 = vmatmul.mubr.bf16.gmra.mrb[0].mxu0 %v1110
    %v1146 = vpop.f32.mrb[0].mxu0
    %v1147 = vadd.f32 0.0, %v1146
    %v1148 = vpop.f32.mrb[0].mxu0
    %v1149 = vpop.f32.mrb[0].mxu0
    %v1150 = vadd.f32 0.0, %v1149
    %v1151 = vpop.f32.mrb[0].mxu0
    %1152 = vdwg.mxu0
    %v1157 = vunpack.c.l.b16 %v1088
    %v1158 = vunpack.c.l.b16 %v1089
    %v1159 = vunpack.c.l.b16 %v1090
    %v1160 = vunpack.c.l.b16 %v1091
    %v1161 = vpack.c.b16 %v1158, %v1157
    %v1162 = vpack.c.b16 %v1160, %v1159
    %v1166 = vsel %vm898, %v1044, 0
    %1168 = vmatprep.subr.bf16.mxu0 0
    %1169 = vmatpush1.bf16.msra.mxu0 %v1161
    %1170 = vmatprep.subr.bf16.mxu0 0
    %1171 = vmatpush1.bf16.msra.mxu0 %v1162
    %1172 = vmatprep.subr.bf16.mxu0 0
    %1173 = vmatpush1.bf16.msra.mxu0 0
    %1174 = vmatprep.subr.bf16.mxu0 0
    %1175 = vmatpush1.bf16.msra.mxu0 0
    %1176 = vmatprep.subr.bf16.mxu0 0
    %1177 = vmatpush1.bf16.msra.mxu0 0
    %1178 = vmatprep.subr.bf16.mxu0 0
    %1179 = vmatpush1.bf16.msra.mxu0 0
    %1180 = vmatprep.subr.bf16.mxu0 0
    %1181 = vmatpush1.bf16.msra.mxu0 0
    %1182 = vmatprep.subr.bf16.mxu0 0
    %1183 = vmatpush1.bf16.msra.mxu0 0
    %1184 = vmatprep.subr.bf16.mxu0 0
    %1185 = vmatpush1.bf16.msra.mxu0 0
    %1186 = vmatprep.subr.bf16.mxu0 0
    %1187 = vmatpush1.bf16.msra.mxu0 0
    %1188 = vmatprep.subr.bf16.mxu0 0
    %1189 = vmatpush1.bf16.msra.mxu0 0
    %1190 = vmatprep.subr.bf16.mxu0 0
    %1191 = vmatpush1.bf16.msra.mxu0 0
    %1192 = vmatprep.subr.bf16.mxu0 0
    %1193 = vmatpush1.bf16.msra.mxu0 0
    %1194 = vmatprep.subr.bf16.mxu0 0
    %1195 = vmatpush1.bf16.msra.mxu0 0
    %1196 = vmatprep.subr.bf16.mxu0 0
    %1197 = vmatpush1.bf16.msra.mxu0 0
    %1198 = vmatprep.subr.bf16.mxu0 0
    %1199 = vmatpush1.bf16.msra.mxu0 0
    %1200 = vmatprep.mubr.bf16.mxu0 0
    %1201 = vmatmul.mubr.bf16.gmra.mrb[0].mxu0 %v1166
    %v1202 = vpop.f32.mrb[0].mxu0
    %v1203 = vadd.f32 %v1147, %v1202
    %v1204 = vpop.f32.mrb[0].mxu0
    %v1205 = vpop.f32.mrb[0].mxu0
    %v1206 = vadd.f32 %v1150, %v1205
    %v1207 = vpop.f32.mrb[0].mxu0
    %1208 = vdwg.mxu0
    %v1209 = vld [vmem:[%s14] sm:$0x1]
    %v1211 = vlaneseq
    %v1212 = vshrl.u32 %v1211, 7
    %v1213 = vsub.s32 0, %v1212
    %v1214 = vrot.slane %v1209, %v1213
    %v1216 = vadd.f32 %v1203, %v1214
    %v1217 = vadd.f32 %v1206, %v1214
    %v1218 = vmul.f32 %v1216, %v1216
    %v1219 = vmul.f32 %v1217, %v1217
    %v1220 = vsel %vm898, %v1218, 0.0
    %1221 = vadd.xlane.f32.xlu0 %v1220
    %v1222 = vpop.xlane.xlu0 %1221
    %v1223 = vsel %vm898, %v1219, 0.0
    %1224 = vadd.xlane.f32.xlu0 %v1223
    %v1225 = vpop.xlane.xlu0 %1224
    %v1226 = vmax.f32 %v1222, 1e-24
    %v1227 = vmax.f32 %v1225, 1e-24
    %v1228 = vrsqrt.pop %v1226
    %v1229 = vrsqrt.pop %v1227
    %v1230 = vmul.f32 %v1216, %v1228
    %v1231 = vmul.f32 %v1217, %v1229
    %v1232 = vmax.f32 %v1230, 0.0
    %v1233 = vmax.f32 %v1231, 0.0
    %v1234 = vld [vmem:[%s15] sm:$0x1]
    %v1236 = vlaneseq
    %v1237 = vshrl.u32 %v1236, 7
    %v1238 = vsub.s32 0, %v1237
    %v1239 = vrot.slane %v1234, %v1238
    %v1241 = vmul.f32 %v1232, %v1239
    %v1242 = vmul.f32 %v1233, %v1239
    %v1243 = vld [vmem:[%s16] sm:$0x1]
    %v1245 = vlaneseq
    %v1246 = vshrl.u32 %v1245, 7
    %v1247 = vsub.s32 0, %v1246
    %v1248 = vrot.slane %v1243, %v1247
    %v1250 = vadd.f32 %v1241, %v1248
    %v1251 = vadd.f32 %v1242, %v1248
    %v1252 = vadd.f32 %v1250, %v1042
    %v1253 = vadd.f32 %v1251, %v1043
    %v1254 = vlaneseq
    %v1255 = vand.u32 %v1254, 127
    %v1256 = vld [vmem:[%s0] sm:$0xff]
    %v1257 = vld [vmem:[%s0 + $0x8] sm:$0xff]
    %v1258 = vld [vmem:[%s0 + $0x10] sm:$0xff]
    %v1259 = vld [vmem:[%s0 + $0x18] sm:$0xff]
    %1260 = vset.pattern.permute.xlu0 0
    %1261 = vperm.xlu0 %1260, %v1256
    %v1262 = vpop.permute.xlu0 %1261
    %1263 = vset.pattern.permute.xlu0 0
    %1264 = vperm.xlu0 %1263, %v1257
    %v1265 = vpop.permute.xlu0 %1264
    %1266 = vset.pattern.permute.xlu0 0
    %1267 = vperm.xlu0 %1266, %v1258
    %v1268 = vpop.permute.xlu0 %1267
    %1269 = vset.pattern.permute.xlu0 0
    %1270 = vperm.xlu0 %1269, %v1259
    %v1271 = vpop.permute.xlu0 %1270
    %vm1272 = vcmp.eq.s32.totalorder %v1255, %v1262
    %vm1273 = vcmp.eq.s32.totalorder %v1255, %v1265
    %vm1274 = vcmp.eq.s32.totalorder %v1255, %v1268
    %vm1275 = vcmp.eq.s32.totalorder %v1255, %v1271
    %v1276 = vsel %vm1272, 1, 0
    %v1277 = vsel %vm1273, 1, 0
    %v1278 = vsel %vm1274, 1, 0
    %v1279 = vsel %vm1275, 1, 0
    %v1280 = vcvt.s32.f32 %v1276
    %v1281 = vcvt.s32.f32 %v1277
    %v1282 = vcvt.s32.f32 %v1278
    %v1283 = vcvt.s32.f32 %v1279
    %v1284 = vpack.c.bf16 %v1281, %v1280
    %v1285 = vpack.c.bf16 %v1283, %v1282
    %v1286 = vld [vmem:[%s1] sm:$0xff]
    %v1287 = vld [vmem:[%s1 + $0x8] sm:$0xff]
    %v1288 = vld [vmem:[%s1 + $0x10] sm:$0xff]
    %v1289 = vld [vmem:[%s1 + $0x18] sm:$0xff]
    %1290 = vset.pattern.permute.xlu0 0
    %1291 = vperm.xlu0 %1290, %v1286
    %v1292 = vpop.permute.xlu0 %1291
    %1293 = vset.pattern.permute.xlu0 0
    %1294 = vperm.xlu0 %1293, %v1287
    %v1295 = vpop.permute.xlu0 %1294
    %1296 = vset.pattern.permute.xlu0 0
    %1297 = vperm.xlu0 %1296, %v1288
    %v1298 = vpop.permute.xlu0 %1297
    %1299 = vset.pattern.permute.xlu0 0
    %1300 = vperm.xlu0 %1299, %v1289
    %v1301 = vpop.permute.xlu0 %1300
    %vm1302 = vcmp.eq.s32.totalorder %v1255, %v1292
    %vm1303 = vcmp.eq.s32.totalorder %v1255, %v1295
    %vm1304 = vcmp.eq.s32.totalorder %v1255, %v1298
    %vm1305 = vcmp.eq.s32.totalorder %v1255, %v1301
    %v1306 = vsel %vm1302, 1, 0
    %v1307 = vsel %vm1303, 1, 0
    %v1308 = vsel %vm1304, 1, 0
    %v1309 = vsel %vm1305, 1, 0
    %v1310 = vcvt.s32.f32 %v1306
    %v1311 = vcvt.s32.f32 %v1307
    %v1312 = vcvt.s32.f32 %v1308
    %v1313 = vcvt.s32.f32 %v1309
    %v1314 = vpack.c.bf16 %v1311, %v1310
    %v1315 = vpack.c.bf16 %v1313, %v1312
    %v1316 = vpack.c.bf16 %v1253, %v1252
    %v1317 = vld [vmem:[%s17] sm:$0xf]
    %v1318 = vld [vmem:[%s17 + $0x4] sm:$0xf]
    %v1319 = vld [vmem:[%s17 + $0x8] sm:$0xf]
    %v1320 = vld [vmem:[%s17 + $0xc] sm:$0xf]
    %v1325 = vunpack.c.l.b16 %v1317
    %v1326 = vunpack.c.l.b16 %v1318
    %v1327 = vunpack.c.l.b16 %v1319
    %v1328 = vunpack.c.l.b16 %v1320
    %v1329 = vpack.c.b16 %v1326, %v1325
    %v1330 = vpack.c.b16 %v1328, %v1327
    %v1334 = vsel %vm898, %v1316, 0
    %1336 = vmatprep.subr.bf16.mxu0 0
    %1337 = vmatpush1.bf16.msra.mxu0 %v1329
    %1338 = vmatprep.subr.bf16.mxu0 0
    %1339 = vmatpush1.bf16.msra.mxu0 %v1330
    %1340 = vmatprep.subr.bf16.mxu0 0
    %1341 = vmatpush1.bf16.msra.mxu0 0
    %1342 = vmatprep.subr.bf16.mxu0 0
    %1343 = vmatpush1.bf16.msra.mxu0 0
    %1344 = vmatprep.subr.bf16.mxu0 0
    %1345 = vmatpush1.bf16.msra.mxu0 0
    %1346 = vmatprep.subr.bf16.mxu0 0
    %1347 = vmatpush1.bf16.msra.mxu0 0
    %1348 = vmatprep.subr.bf16.mxu0 0
    %1349 = vmatpush1.bf16.msra.mxu0 0
    %1350 = vmatprep.subr.bf16.mxu0 0
    %1351 = vmatpush1.bf16.msra.mxu0 0
    %1352 = vmatprep.subr.bf16.mxu0 0
    %1353 = vmatpush1.bf16.msra.mxu0 0
    %1354 = vmatprep.subr.bf16.mxu0 0
    %1355 = vmatpush1.bf16.msra.mxu0 0
    %1356 = vmatprep.subr.bf16.mxu0 0
    %1357 = vmatpush1.bf16.msra.mxu0 0
    %1358 = vmatprep.subr.bf16.mxu0 0
    %1359 = vmatpush1.bf16.msra.mxu0 0
    %1360 = vmatprep.subr.bf16.mxu0 0
    %1361 = vmatpush1.bf16.msra.mxu0 0
    %1362 = vmatprep.subr.bf16.mxu0 0
    %1363 = vmatpush1.bf16.msra.mxu0 0
    %1364 = vmatprep.subr.bf16.mxu0 0
    %1365 = vmatpush1.bf16.msra.mxu0 0
    %1366 = vmatprep.subr.bf16.mxu0 0
    %1367 = vmatpush1.bf16.msra.mxu0 0
    %1368 = vmatprep.mubr.bf16.mxu0 0
    %1369 = vmatmul.mubr.bf16.gmra.mrb[0].mxu0 %v1334
    %v1370 = vpop.f32.mrb[0].mxu0
    %v1371 = vadd.f32 0.0, %v1370
    %v1372 = vpop.f32.mrb[0].mxu0
    %v1373 = vpop.f32.mrb[0].mxu0
    %v1374 = vadd.f32 0.0, %v1373
    %v1375 = vpop.f32.mrb[0].mxu0
    %1376 = vdwg.mxu0
    %v1377 = vpack.c.bf16 %v1374, %v1371
    %v1378 = vld [vmem:[%s18] sm:$0xf]
    %v1379 = vld [vmem:[%s18 + $0x4] sm:$0xf]
    %v1380 = vld [vmem:[%s18 + $0x8] sm:$0xf]
    %v1381 = vld [vmem:[%s18 + $0xc] sm:$0xf]
    %v1386 = vunpack.c.l.b16 %v1378
    %v1387 = vunpack.c.l.b16 %v1379
    %v1388 = vunpack.c.l.b16 %v1380
    %v1389 = vunpack.c.l.b16 %v1381
    %v1390 = vpack.c.b16 %v1387, %v1386
    %v1391 = vpack.c.b16 %v1389, %v1388
    %1394 = vmatprep.subr.bf16.mxu0 0
    %1395 = vmatpush1.bf16.msra.mxu0 %v1390
    %1396 = vmatprep.subr.bf16.mxu0 0
    %1397 = vmatpush1.bf16.msra.mxu0 %v1391
    %1398 = vmatprep.subr.bf16.mxu0 0
    %1399 = vmatpush1.bf16.msra.mxu0 0
    %1400 = vmatprep.subr.bf16.mxu0 0
    %1401 = vmatpush1.bf16.msra.mxu0 0
    %1402 = vmatprep.subr.bf16.mxu0 0
    %1403 = vmatpush1.bf16.msra.mxu0 0
    %1404 = vmatprep.subr.bf16.mxu0 0
    %1405 = vmatpush1.bf16.msra.mxu0 0
    %1406 = vmatprep.subr.bf16.mxu0 0
    %1407 = vmatpush1.bf16.msra.mxu0 0
    %1408 = vmatprep.subr.bf16.mxu0 0
    %1409 = vmatpush1.bf16.msra.mxu0 0
    %1410 = vmatprep.subr.bf16.mxu0 0
    %1411 = vmatpush1.bf16.msra.mxu0 0
    %1412 = vmatprep.subr.bf16.mxu0 0
    %1413 = vmatpush1.bf16.msra.mxu0 0
    %1414 = vmatprep.subr.bf16.mxu0 0
    %1415 = vmatpush1.bf16.msra.mxu0 0
    %1416 = vmatprep.subr.bf16.mxu0 0
    %1417 = vmatpush1.bf16.msra.mxu0 0
    %1418 = vmatprep.subr.bf16.mxu0 0
    %1419 = vmatpush1.bf16.msra.mxu0 0
    %1420 = vmatprep.subr.bf16.mxu0 0
    %1421 = vmatpush1.bf16.msra.mxu0 0
    %1422 = vmatprep.subr.bf16.mxu0 0
    %1423 = vmatpush1.bf16.msra.mxu0 0
    %1424 = vmatprep.subr.bf16.mxu0 0
    %1425 = vmatpush1.bf16.msra.mxu0 0
    %1426 = vmatprep.mubr.bf16.mxu0 0
    %1427 = vmatmul.mubr.bf16.gmra.mrb[0].mxu0 %v1334
    %v1428 = vpop.f32.mrb[0].mxu0
    %v1429 = vadd.f32 0.0, %v1428
    %v1430 = vpop.f32.mrb[0].mxu0
    %v1431 = vpop.f32.mrb[0].mxu0
    %v1432 = vadd.f32 0.0, %v1431
    %v1433 = vpop.f32.mrb[0].mxu0
    %1434 = vdwg.mxu0
    %v1435 = vpack.c.bf16 %v1432, %v1429
    %v1437 = vsel %vm820, %v1314, 0
    %v1440 = vsel %vm820, %v1315, 0
    %1442 = vmatprep.subr.bf16.mxu0 0
    %1443 = vmatpush1.bf16.msra.mxu0 %v1435
    %1444 = vmatprep.subr.bf16.mxu0 0
    %1445 = vmatpush1.bf16.msra.mxu0 0
    %1446 = vmatprep.subr.bf16.mxu0 0
    %1447 = vmatpush1.bf16.msra.mxu0 0
    %1448 = vmatprep.subr.bf16.mxu0 0
    %1449 = vmatpush1.bf16.msra.mxu0 0
    %1450 = vmatprep.subr.bf16.mxu0 0
    %1451 = vmatpush1.bf16.msra.mxu0 0
    %1452 = vmatprep.subr.bf16.mxu0 0
    %1453 = vmatpush1.bf16.msra.mxu0 0
    %1454 = vmatprep.subr.bf16.mxu0 0
    %1455 = vmatpush1.bf16.msra.mxu0 0
    %1456 = vmatprep.subr.bf16.mxu0 0
    %1457 = vmatpush1.bf16.msra.mxu0 0
    %1458 = vmatprep.subr.bf16.mxu0 0
    %1459 = vmatpush1.bf16.msra.mxu0 0
    %1460 = vmatprep.subr.bf16.mxu0 0
    %1461 = vmatpush1.bf16.msra.mxu0 0
    %1462 = vmatprep.subr.bf16.mxu0 0
    %1463 = vmatpush1.bf16.msra.mxu0 0
    %1464 = vmatprep.subr.bf16.mxu0 0
    %1465 = vmatpush1.bf16.msra.mxu0 0
    %1466 = vmatprep.subr.bf16.mxu0 0
    %1467 = vmatpush1.bf16.msra.mxu0 0
    %1468 = vmatprep.subr.bf16.mxu0 0
    %1469 = vmatpush1.bf16.msra.mxu0 0
    %1470 = vmatprep.subr.bf16.mxu0 0
    %1471 = vmatpush1.bf16.msra.mxu0 0
    %1472 = vmatprep.subr.bf16.mxu0 0
    %1473 = vmatpush1.bf16.msra.mxu0 0
    %1474 = vmatprep.mubr.bf16.mxu0 0
    %1475 = vmatmul.mubr.bf16.gmra.mrb[0].mxu0 %v1437
    %v1476 = vpop.f32.mrb[0].mxu0
    %v1477 = vadd.f32 0.0, %v1476
    %v1478 = vpop.f32.mrb[0].mxu0
    %v1479 = vpop.f32.mrb[0].mxu0
    %v1480 = vadd.f32 0.0, %v1479
    %v1481 = vpop.f32.mrb[0].mxu0
    %1482 = vmatprep.mubr.bf16.mxu0 0
    %1483 = vmatmul.mubr.bf16.gmra.mrb[0].mxu0 %v1440
    %v1484 = vpop.f32.mrb[0].mxu0
    %v1485 = vadd.f32 0.0, %v1484
    %v1486 = vpop.f32.mrb[0].mxu0
    %v1487 = vpop.f32.mrb[0].mxu0
    %v1488 = vadd.f32 0.0, %v1487
    %v1489 = vpop.f32.mrb[0].mxu0
    %1490 = vdwg.mxu0
    %v1492 = vsel %vm820, %v1284, 0
    %v1495 = vsel %vm820, %v1285, 0
    %1497 = vmatprep.subr.bf16.mxu0 0
    %1498 = vmatpush1.bf16.msra.mxu0 %v1377
    %1499 = vmatprep.subr.bf16.mxu0 0
    %1500 = vmatpush1.bf16.msra.mxu0 0
    %1501 = vmatprep.subr.bf16.mxu0 0
    %1502 = vmatpush1.bf16.msra.mxu0 0
    %1503 = vmatprep.subr.bf16.mxu0 0
    %1504 = vmatpush1.bf16.msra.mxu0 0
    %1505 = vmatprep.subr.bf16.mxu0 0
    %1506 = vmatpush1.bf16.msra.mxu0 0
    %1507 = vmatprep.subr.bf16.mxu0 0
    %1508 = vmatpush1.bf16.msra.mxu0 0
    %1509 = vmatprep.subr.bf16.mxu0 0
    %1510 = vmatpush1.bf16.msra.mxu0 0
    %1511 = vmatprep.subr.bf16.mxu0 0
    %1512 = vmatpush1.bf16.msra.mxu0 0
    %1513 = vmatprep.subr.bf16.mxu0 0
    %1514 = vmatpush1.bf16.msra.mxu0 0
    %1515 = vmatprep.subr.bf16.mxu0 0
    %1516 = vmatpush1.bf16.msra.mxu0 0
    %1517 = vmatprep.subr.bf16.mxu0 0
    %1518 = vmatpush1.bf16.msra.mxu0 0
    %1519 = vmatprep.subr.bf16.mxu0 0
    %1520 = vmatpush1.bf16.msra.mxu0 0
    %1521 = vmatprep.subr.bf16.mxu0 0
    %1522 = vmatpush1.bf16.msra.mxu0 0
    %1523 = vmatprep.subr.bf16.mxu0 0
    %1524 = vmatpush1.bf16.msra.mxu0 0
    %1525 = vmatprep.subr.bf16.mxu0 0
    %1526 = vmatpush1.bf16.msra.mxu0 0
    %1527 = vmatprep.subr.bf16.mxu0 0
    %1528 = vmatpush1.bf16.msra.mxu0 0
    %1529 = vmatprep.mubr.bf16.mxu0 0
    %1530 = vmatmul.mubr.bf16.gmra.mrb[0].mxu0 %v1492
    %v1531 = vpop.f32.mrb[0].mxu0
    %v1532 = vadd.f32 %v1477, %v1531
    %v1533 = vpop.f32.mrb[0].mxu0
    %v1534 = vpop.f32.mrb[0].mxu0
    %v1535 = vadd.f32 %v1480, %v1534
    %v1536 = vpop.f32.mrb[0].mxu0
    %1537 = vmatprep.mubr.bf16.mxu0 0
    %1538 = vmatmul.mubr.bf16.gmra.mrb[0].mxu0 %v1495
    %v1539 = vpop.f32.mrb[0].mxu0
    %v1540 = vadd.f32 %v1485, %v1539
    %v1541 = vpop.f32.mrb[0].mxu0
    %v1542 = vpop.f32.mrb[0].mxu0
    %v1543 = vadd.f32 %v1488, %v1542
    %v1544 = vpop.f32.mrb[0].mxu0
    %1545 = vdwg.mxu0
    %v1546 = vld [vmem:[%s19] sm:$0x1]
    %v1548 = vlaneseq
    %v1549 = vshrl.u32 %v1548, 7
    %v1550 = vsub.s32 0, %v1549
    %v1551 = vrot.slane %v1546, %v1550
    %v1553 = vadd.f32 %v1532, %v1551
    %v1554 = vadd.f32 %v1535, %v1551
    %v1555 = vadd.f32 %v1540, %v1551
    %v1556 = vadd.f32 %v1543, %v1551
    %v1557 = vmax.f32 %v1553, 0.0
    %v1558 = vmax.f32 %v1554, 0.0
    %v1559 = vmax.f32 %v1555, 0.0
    %v1560 = vmax.f32 %v1556, 0.0
    %v1561 = vpack.c.bf16 %v1558, %v1557
    %v1562 = vpack.c.bf16 %v1560, %v1559
    %v1563 = vld [vmem:[%s20] sm:$0xf]
    %v1564 = vld [vmem:[%s20 + $0x4] sm:$0xf]
    %v1565 = vld [vmem:[%s20 + $0x8] sm:$0xf]
    %v1566 = vld [vmem:[%s20 + $0xc] sm:$0xf]
    %v1567 = vld [vmem:[%s21] sm:$0x1]
    %v1569 = vlaneseq
    %v1570 = vshrl.u32 %v1569, 7
    %v1571 = vsub.s32 0, %v1570
    %v1572 = vrot.slane %v1567, %v1571
    %v1578 = vunpack.c.l.b16 %v1563
    %v1579 = vunpack.c.l.b16 %v1564
    %v1580 = vunpack.c.l.b16 %v1565
    %v1581 = vunpack.c.l.b16 %v1566
    %v1582 = vpack.c.b16 %v1579, %v1578
    %v1583 = vpack.c.b16 %v1581, %v1580
    %v1587 = vsel %vm898, %v1561, 0
    %v1590 = vsel %vm898, %v1562, 0
    %1592 = vmatprep.subr.bf16.mxu0 0
    %1593 = vmatpush1.bf16.msra.mxu0 %v1582
    %1594 = vmatprep.subr.bf16.mxu0 0
    %1595 = vmatpush1.bf16.msra.mxu0 %v1583
    %1596 = vmatprep.subr.bf16.mxu0 0
    %1597 = vmatpush1.bf16.msra.mxu0 0
    %1598 = vmatprep.subr.bf16.mxu0 0
    %1599 = vmatpush1.bf16.msra.mxu0 0
    %1600 = vmatprep.subr.bf16.mxu0 0
    %1601 = vmatpush1.bf16.msra.mxu0 0
    %1602 = vmatprep.subr.bf16.mxu0 0
    %1603 = vmatpush1.bf16.msra.mxu0 0
    %1604 = vmatprep.subr.bf16.mxu0 0
    %1605 = vmatpush1.bf16.msra.mxu0 0
    %1606 = vmatprep.subr.bf16.mxu0 0
    %1607 = vmatpush1.bf16.msra.mxu0 0
    %1608 = vmatprep.subr.bf16.mxu0 0
    %1609 = vmatpush1.bf16.msra.mxu0 0
    %1610 = vmatprep.subr.bf16.mxu0 0
    %1611 = vmatpush1.bf16.msra.mxu0 0
    %1612 = vmatprep.subr.bf16.mxu0 0
    %1613 = vmatpush1.bf16.msra.mxu0 0
    %1614 = vmatprep.subr.bf16.mxu0 0
    %1615 = vmatpush1.bf16.msra.mxu0 0
    %1616 = vmatprep.subr.bf16.mxu0 0
    %1617 = vmatpush1.bf16.msra.mxu0 0
    %1618 = vmatprep.subr.bf16.mxu0 0
    %1619 = vmatpush1.bf16.msra.mxu0 0
    %1620 = vmatprep.subr.bf16.mxu0 0
    %1621 = vmatpush1.bf16.msra.mxu0 0
    %1622 = vmatprep.subr.bf16.mxu0 0
    %1623 = vmatpush1.bf16.msra.mxu0 0
    %1624 = vmatprep.mubr.bf16.mxu0 0
    %1625 = vmatmul.mubr.bf16.gmra.mrb[0].mxu0 %v1587
    %v1626 = vpop.f32.mrb[0].mxu0
    %v1627 = vadd.f32 %v1572, %v1626
    %v1628 = vpop.f32.mrb[0].mxu0
    %v1629 = vpop.f32.mrb[0].mxu0
    %v1630 = vadd.f32 %v1572, %v1629
    %v1631 = vpop.f32.mrb[0].mxu0
    %1632 = vmatprep.mubr.bf16.mxu0 0
    %1633 = vmatmul.mubr.bf16.gmra.mrb[0].mxu0 %v1590
    %v1634 = vpop.f32.mrb[0].mxu0
    %v1635 = vadd.f32 %v1572, %v1634
    %v1636 = vpop.f32.mrb[0].mxu0
    %v1637 = vpop.f32.mrb[0].mxu0
    %v1638 = vadd.f32 %v1572, %v1637
    %v1639 = vpop.f32.mrb[0].mxu0
    %1640 = vdwg.mxu0
    %v1641 = vmax.f32 %v1627, 0.0
    %v1642 = vmax.f32 %v1630, 0.0
    %v1643 = vmax.f32 %v1635, 0.0
    %v1644 = vmax.f32 %v1638, 0.0
    %v1645 = vpack.c.bf16 %v1642, %v1641
    %v1646 = vpack.c.bf16 %v1644, %v1643
    %v1647 = vld [vmem:[%s22] sm:$0xf]
    %v1648 = vld [vmem:[%s22 + $0x4] sm:$0xf]
    %v1649 = vld [vmem:[%s23] sm:$0x1]
    %v1651 = vlaneseq
    %v1652 = vshrl.u32 %v1651, 7
    %v1653 = vsub.s32 0, %v1652
    %v1654 = vrot.slane %v1649, %v1653
    %v1658 = vunpack.c.l.b16 %v1647
    %v1659 = vunpack.c.l.b16 %v1648
    %v1660 = vpack.c.b16 %v1659, %v1658
    %v1663 = vsel %vm820, %v1645, 0
    %v1666 = vsel %vm820, %v1646, 0
    %1668 = vmatprep.subr.bf16.mxu0 0
    %1669 = vmatpush1.bf16.msra.mxu0 %v1660
    %1670 = vmatprep.subr.bf16.mxu0 0
    %1671 = vmatpush1.bf16.msra.mxu0 0
    %1672 = vmatprep.subr.bf16.mxu0 0
    %1673 = vmatpush1.bf16.msra.mxu0 0
    %1674 = vmatprep.subr.bf16.mxu0 0
    %1675 = vmatpush1.bf16.msra.mxu0 0
    %1676 = vmatprep.subr.bf16.mxu0 0
    %1677 = vmatpush1.bf16.msra.mxu0 0
    %1678 = vmatprep.subr.bf16.mxu0 0
    %1679 = vmatpush1.bf16.msra.mxu0 0
    %1680 = vmatprep.subr.bf16.mxu0 0
    %1681 = vmatpush1.bf16.msra.mxu0 0
    %1682 = vmatprep.subr.bf16.mxu0 0
    %1683 = vmatpush1.bf16.msra.mxu0 0
    %1684 = vmatprep.subr.bf16.mxu0 0
    %1685 = vmatpush1.bf16.msra.mxu0 0
    %1686 = vmatprep.subr.bf16.mxu0 0
    %1687 = vmatpush1.bf16.msra.mxu0 0
    %1688 = vmatprep.subr.bf16.mxu0 0
    %1689 = vmatpush1.bf16.msra.mxu0 0
    %1690 = vmatprep.subr.bf16.mxu0 0
    %1691 = vmatpush1.bf16.msra.mxu0 0
    %1692 = vmatprep.subr.bf16.mxu0 0
    %1693 = vmatpush1.bf16.msra.mxu0 0
    %1694 = vmatprep.subr.bf16.mxu0 0
    %1695 = vmatpush1.bf16.msra.mxu0 0
    %1696 = vmatprep.subr.bf16.mxu0 0
    %1697 = vmatpush1.bf16.msra.mxu0 0
    %1698 = vmatprep.subr.bf16.mxu0 0
    %1699 = vmatpush1.bf16.msra.mxu0 0
    %1700 = vmatprep.mubr.bf16.mxu0 0
    %1701 = vmatmul.mubr.bf16.gmra.mrb[0].mxu0 %v1663
    %v1702 = vpop.f32.mrb[0].mxu0
    %v1703 = vadd.f32 %v1654, %v1702
    %v1704 = vpop.f32.mrb[0].mxu0
    %v1705 = vpop.f32.mrb[0].mxu0
    %v1706 = vadd.f32 %v1654, %v1705
    %v1707 = vpop.f32.mrb[0].mxu0
    %1708 = vmatprep.mubr.bf16.mxu0 0
    %1709 = vmatmul.mubr.bf16.gmra.mrb[0].mxu0 %v1666
    %v1710 = vpop.f32.mrb[0].mxu0
    %v1711 = vadd.f32 %v1654, %v1710
    %v1712 = vpop.f32.mrb[0].mxu0
    %v1713 = vpop.f32.mrb[0].mxu0
    %v1714 = vadd.f32 %v1654, %v1713
    %v1715 = vpop.f32.mrb[0].mxu0
    %1716 = vdwg.mxu0
    %1717 = vst [vmem:[#allocation2] sm:$0xff] %v1703
    %1718 = vst [vmem:[#allocation2 + $0x8] sm:$0xff] %v1706
    %1719 = vst [vmem:[#allocation2 + $0x10] sm:$0xff] %v1711
    %1720 = vst [vmem:[#allocation2 + $0x18] sm:$0xff] %v1714
    // Predicated region
    $region98: #{tpu_custom_call.1} parent=1 // pred_check
      _
    $region99: #{tpu_custom_call.1} parent=1 // pred_check_branch
      %1722 = sbr.rel (0) target = $region101
    $region100: #{tpu_custom_call.1} parent=1 // pred_region
      %s1724 = ssub.s32 512, 512
      %1725 = vsyncadd [#allocation3], %s1724
      %s1726 = sshll.u32 [#allocation2], 4
      %s1727 = int_to_ptr.vmem [resolvable:$true] %s1726
      %1732 = dma.vmem_to_hbm [thread:$0]  %s1727, 512, %s24, [#allocation3], 128, 128, 8
    $region101: #{tpu_custom_call.1} parent=1 // pred_fallthru
      _
    // Predicated region
    $region102: #{tpu_custom_call.1} parent=1 // pred_check
      _
    $region103: #{tpu_custom_call.1} parent=1 // pred_check_branch
      %1734 = sbr.rel (0) target = $region105
    $region104: #{tpu_custom_call.1} parent=1 // pred_region
      %1735 = dma.done [#allocation3], 512
    $region105: #{tpu_custom_call.1} parent=1 // pred_fallthru
      _
    %1736 = vsyncpa [#allocation3], 1

</llo_original>
